<compile_context>
chip_gen: v6e
topology: v6e:2x2x1
jax: 0.10.0
libtpu: 0.0.40
codegen_flags: <defaults>
</compile_context>

<pallas_src>
import functools

import jax
import jax.numpy as jnp
from jax.experimental import pallas as pl
from jax.experimental.pallas import tpu as pltpu

EPS = 1e-5


def _conv_bn_relu_kernel(w_ref, x_ref, gamma_ref, beta_ref, o_ref):
    # w_ref:     (tn, Cin)  slab of the 1x1 conv weight (native (Cout, Cin) layout)
    # x_ref:     (Cin, M)   all spatial positions; constant index_map -> fetched once
    # gamma_ref: (tn, 1)
    # beta_ref:  (tn, 1)
    # o_ref:     (tn, M)
    # 1x1 conv == matmul: feed the MXU bf16 operands, accumulate in f32.
    w_bf = w_ref[...].astype(jnp.bfloat16)
    x_bf = x_ref[...].astype(jnp.bfloat16)
    y = jnp.dot(w_bf, x_bf, preferred_element_type=jnp.float32)          # (tn, M) f32

    # BatchNorm (training mode): biased variance over batch*spatial (axis=1 here).
    m = y.shape[1]
    inv_m = 1.0 / m
    mean = jnp.sum(y, axis=1, keepdims=True) * inv_m                      # (tn, 1)
    diff = y - mean
    var = jnp.sum(diff * diff, axis=1, keepdims=True) * inv_m             # (tn, 1)

    # Fold gamma into the per-channel scale before touching the (tn, M) tensor.
    scale = jax.lax.rsqrt(var + EPS) * gamma_ref[...]                     # (tn, 1)
    out = diff * scale + beta_ref[...]
    o_ref[...] = jnp.maximum(out, 0.0).astype(o_ref.dtype)


@functools.partial(jax.jit, static_argnames=("tn",))
def conv_bn_relu(x_nchw, weight, gamma, beta, *, tn=256):
    """x_nchw: (N, Cin, H, W); weight: (Cout, Cin, 1, 1); gamma/beta: (Cout,).

    tn: output-channel slab width.  256 is a good default on all generations
        (v7x: 128 gives each TensorCore more steps to pipeline; v6e: 512 worth a sweep).
    """
    n, cin, h, w = x_nchw.shape
    cout = weight.shape[0]
    assert cout % tn == 0

    m = n * h * w
    # NCHW -> (Cin, M): a pure (free) reshape when N == 1; transpose only if N > 1.
    if n == 1:
        x_cm = x_nchw.reshape(cin, m)
    else:
        x_cm = jnp.transpose(x_nchw, (1, 0, 2, 3)).reshape(cin, m)

    w2d = weight.reshape(cout, cin)          # native layout, no transpose
    gamma2d = gamma.reshape(cout, 1)
    beta2d = beta.reshape(cout, 1)

    grid = (cout // tn,)
    itemsize = jnp.dtype(x_nchw.dtype).itemsize
    cost = pl.CostEstimate(
        flops=2 * m * cin * cout,
        transcendentals=0,
        bytes_accessed=(w2d.size * jnp.dtype(weight.dtype).itemsize
                        + (x_cm.size + cout * m + 2 * cout) * itemsize),
    )

    out_cm = pl.pallas_call(
        _conv_bn_relu_kernel,
        out_shape=jax.ShapeDtypeStruct((cout, m), x_nchw.dtype),
        grid_spec=pltpu.PrefetchScalarGridSpec(
            num_scalar_prefetch=0,
            grid=grid,
            in_specs=[
                pl.BlockSpec((tn, cin), lambda j: (j, 0)),   # weight slab
                pl.BlockSpec((cin, m), lambda j: (0, 0)),    # x (constant across grid)
                pl.BlockSpec((tn, 1), lambda j: (j, 0)),     # gamma slab
                pl.BlockSpec((tn, 1), lambda j: (j, 0)),     # beta slab
            ],
            out_specs=pl.BlockSpec((tn, m), lambda j: (j, 0)),
        ),
        compiler_params=pltpu.CompilerParams(
            dimension_semantics=("parallel",),
        ),
        cost_estimate=cost,
    )(w2d, x_cm, gamma2d, beta2d)

    # (Cout, M) -> NCHW: free reshape for N == 1.
    if n == 1:
        return out_cm.reshape(1, cout, h, w)
    return jnp.transpose(out_cm.reshape(cout, n, h, w), (1, 0, 2, 3))


def _reference(x_nchw, weight, gamma, beta):
    """Pure-f32 JAX reference of the PyTorch forward (conv1x1 -> BN(train) -> ReLU)."""
    n, cin, h, w = x_nchw.shape
    cout = weight.shape[0]
    x2d = x_nchw.reshape(n, cin, h * w).astype(jnp.float32)
    w2d = weight.reshape(cout, cin).astype(jnp.float32)
    y = jnp.einsum("oc,ncm->nom", w2d, x2d)                               # (n, cout, hw)
    mean = jnp.mean(y, axis=(0, 2), keepdims=True)
    var = jnp.mean((y - mean) ** 2, axis=(0, 2), keepdims=True)
    out = (y - mean) * jax.lax.rsqrt(var + EPS) * gamma[None, :, None] + beta[None, :, None]
    out = jnp.maximum(out, 0.0)
    return out.reshape(n, cout, h, w).astype(x_nchw.dtype)


if __name__ == "__main__":
    key = jax.random.PRNGKey(0)
    k_x, k_w, k_g, k_b = jax.random.split(key, 4)

    # Shapes fixed by the module: Conv2d(1024,1024,1x1) on a (1, 1024, 14, 14) input.
    N, C, H, W = 1, 1024, 14, 14
    x = jax.random.normal(k_x, (N, C, H, W), dtype=jnp.float32)

    fan_in = C  # 1x1 kernel
    weight = jax.random.normal(k_w, (C, C, 1, 1), dtype=jnp.float32) * (1.0 / fan_in) ** 0.5
    gamma = 1.0 + 0.1 * jax.random.normal(k_g, (C,), dtype=jnp.float32)
    beta = 0.1 * jax.random.normal(k_b, (C,), dtype=jnp.float32)

    out = jax.block_until_ready(conv_bn_relu(x, weight, gamma, beta))
    ref = jax.block_until_ready(_reference(x, weight, gamma, beta))

    assert out.shape == (N, C, H, W)
    # bf16 MXU operands (f32 accumulation) vs pure-f32 reference -> slightly looser tol.
    max_err = float(jnp.max(jnp.abs(out - ref)))
    assert jnp.allclose(out, ref, atol=3e-2, rtol=3e-2), f"max abs err = {max_err}"

    print("KERNEL_OK")
</pallas_src>

<mosaic_0001>
module attributes {stable_mosaic.version = 11 : i64} {
  func.func @_conv_bn_relu_kernel(%arg0: i32, %arg1: memref<256x1024xf32, #tpu.memory_space<vmem>>, %arg2: memref<1024x196xf32, #tpu.memory_space<vmem>>, %arg3: memref<256x1xf32, #tpu.memory_space<vmem>>, %arg4: memref<256x1xf32, #tpu.memory_space<vmem>>, %arg5: memref<256x196xf32, #tpu.memory_space<vmem>>) attributes {dimension_semantics = [#tpu.dimension_semantics<parallel>], iteration_bounds = array<i64: 4>, scalar_prefetch = 0 : i64, scratch_operands = 0 : i64, tpu.core_type = #tpu.core_type<tc>, window_params = [{transform_indices = @transform_0, window_bounds = array<i64: 256, 1024>}, {pipeline_mode = #tpu.pipeline_mode<synchronous>, transform_indices = @transform_1, window_bounds = array<i64: 1024, 196>}, {transform_indices = @transform_2, window_bounds = array<i64: 256, 1>}, {transform_indices = @transform_3, window_bounds = array<i64: 256, 1>}, {transform_indices = @transform_4, window_bounds = array<i64: 256, 196>}]} {
    %c0 = arith.constant 0 : index
    %c0_0 = arith.constant 0 : index
    %0 = vector.load %arg1[%c0, %c0_0] : memref<256x1024xf32, #tpu.memory_space<vmem>>, vector<256x1024xf32>
    %1 = arith.truncf %0 : vector<256x1024xf32> to vector<256x1024xbf16>
    %c0_1 = arith.constant 0 : index
    %c0_2 = arith.constant 0 : index
    %2 = vector.load %arg2[%c0_1, %c0_2] : memref<1024x196xf32, #tpu.memory_space<vmem>>, vector<1024x196xf32>
    %3 = arith.truncf %2 : vector<1024x196xf32> to vector<1024x196xbf16>
    %cst = arith.constant dense<0.000000e+00> : vector<256x196xf32>
    %4 = tpu.matmul %1, %3, %cst {dimension_numbers = #tpu.dot_dimension_numbers<[1], [0], [0], [1], [0, 0, 1, 1], [], []>} : vector<256x1024xbf16>, vector<1024x196xbf16>, vector<256x196xf32> -> vector<256x196xf32>
    %cst_3 = arith.constant dense<0.000000e+00> : vector<256xf32>
    %5 = vector.multi_reduction <add>, %4, %cst_3 [1] : vector<256x196xf32> to vector<256xf32>
    %6 = vector.shape_cast %5 : vector<256xf32> to vector<256x1xf32>
    %cst_4 = arith.constant 0.00510204071 : f32
    %7 = vector.broadcast %cst_4 : f32 to vector<256x1xf32>
    %8 = arith.mulf %6, %7 : vector<256x1xf32>
    %9 = vector.broadcast %8 : vector<256x1xf32> to vector<256x196xf32>
    %10 = arith.subf %4, %9 : vector<256x196xf32>
    %11 = arith.mulf %10, %10 : vector<256x196xf32>
    %cst_5 = arith.constant dense<0.000000e+00> : vector<256xf32>
    %12 = vector.multi_reduction <add>, %11, %cst_5 [1] : vector<256x196xf32> to vector<256xf32>
    %13 = vector.shape_cast %12 : vector<256xf32> to vector<256x1xf32>
    %cst_6 = arith.constant 0.00510204071 : f32
    %14 = vector.broadcast %cst_6 : f32 to vector<256x1xf32>
    %15 = arith.mulf %13, %14 : vector<256x1xf32>
    %cst_7 = arith.constant 9.99999974E-6 : f32
    %16 = vector.broadcast %cst_7 : f32 to vector<256x1xf32>
    %17 = arith.addf %15, %16 : vector<256x1xf32>
    %18 = math.rsqrt %17 : vector<256x1xf32>
    %c0_8 = arith.constant 0 : index
    %c0_9 = arith.constant 0 : index
    %19 = vector.load %arg3[%c0_8, %c0_9] : memref<256x1xf32, #tpu.memory_space<vmem>>, vector<256x1xf32>
    %20 = arith.mulf %18, %19 : vector<256x1xf32>
    %21 = vector.broadcast %20 : vector<256x1xf32> to vector<256x196xf32>
    %22 = arith.mulf %10, %21 : vector<256x196xf32>
    %c0_10 = arith.constant 0 : index
    %c0_11 = arith.constant 0 : index
    %23 = vector.load %arg4[%c0_10, %c0_11] : memref<256x1xf32, #tpu.memory_space<vmem>>, vector<256x1xf32>
    %24 = vector.broadcast %23 : vector<256x1xf32> to vector<256x196xf32>
    %25 = arith.addf %22, %24 : vector<256x196xf32>
    %cst_12 = arith.constant 0.000000e+00 : f32
    %26 = vector.broadcast %cst_12 : f32 to vector<256x196xf32>
    %27 = arith.maximumf %25, %26 : vector<256x196xf32>
    %c0_13 = arith.constant 0 : index
    %c0_14 = arith.constant 0 : index
    %28 = vector.load %arg5[%c0_13, %c0_14] : memref<256x196xf32, #tpu.memory_space<vmem>>, vector<256x196xf32>
    tpu.vector_store %arg5[%c0_13, %c0_14], %27 {strides = array<i32>} : memref<256x196xf32, #tpu.memory_space<vmem>>, vector<256x196xf32>,
    return
  }
  func.func @transform_0(%arg0: i32) -> (i32, i32) {
    %c0_i32 = arith.constant 0 : i32
    %c0_i32_0 = arith.constant 0 : i32
    return %arg0, %c0_i32 : i32, i32
  }
  func.func @transform_1(%arg0: i32) -> (i32, i32) {
    %c0_i32 = arith.constant 0 : i32
    %c0_i32_0 = arith.constant 0 : i32
    %c0_i32_1 = arith.constant 0 : i32
    return %c0_i32, %c0_i32_0 : i32, i32
  }
  func.func @transform_2(%arg0: i32) -> (i32, i32) {
    %c0_i32 = arith.constant 0 : i32
    %c0_i32_0 = arith.constant 0 : i32
    return %arg0, %c0_i32 : i32, i32
  }
  func.func @transform_3(%arg0: i32) -> (i32, i32) {
    %c0_i32 = arith.constant 0 : i32
    %c0_i32_0 = arith.constant 0 : i32
    return %arg0, %c0_i32 : i32, i32
  }
  func.func @transform_4(%arg0: i32) -> (i32, i32) {
    %c0_i32 = arith.constant 0 : i32
    %c0_i32_0 = arith.constant 0 : i32
    return %arg0, %c0_i32 : i32, i32
  }
}

</mosaic_0001>

<llo_original>
// kernel: conv_bn_relu.1
$region0: #{conv_bn_relu.1}
  #allocation0 [shape = 'u32[]', space=smem, size = 0x4, offset = 0x4, fixed_abs, tag = 'smem constant byte address 0x4 - core index']
  #allocation1 [shape = 'u32[144,128]{1,0:T(1,128)}', space=vmem, size = 0x12000, scoped, tag = 'internal scratch']
  %s0 = inlined_call_operand.vmem [shape: f32[1024,1024], index: 0, kind: input, shape index: {}]
  %s1 = inlined_call_operand.vmem [shape: f32[1024,196], index: 1, kind: input, shape index: {}]
  %s2 = inlined_call_operand.vmem [shape: f32[1024,1], index: 2, kind: input, shape index: {}]
  %s3 = inlined_call_operand.vmem [shape: f32[1024,1], index: 3, kind: input, shape index: {}]
  %s4 = inlined_call_operand.vmem [shape: f32[1024,196], index: 4, kind: output, shape index: {}]
  %s5 = sld [smem:[#allocation0]]
  $region49: #{conv_bn_relu.1} parent=0
    _
  %s7 = ssub.s32 1, %s5
  %s8 = scalar_select 0, %s7, %s5
  loop: start=0, step=1, limit=6
  $region2: #{conv_bn_relu.1} parent=0 // loop_pre_header
    _
  $region3: #{conv_bn_relu.1} parent=0 // loop_header
    %s10 = sphi 0, %s14
    %p11 = scmp.ge.s32.totalorder %s10, 6
    %s20 = sphi 0, %s22
    %s23 = sphi 0, %s20
    %s24 = sphi 0, %s23
    %s40 = sphi 0, %s24
    %s44 = sphi 0, %s44
    %s46 = sphi 0, %s44
    %s47 = sphi 0, %s46
    %s61 = sphi 0, %s47
    %s67 = sphi 0, %s69
    %s70 = sphi 0, %s67
    %s71 = sphi 0, %s70
    %s87 = sphi 0, %s71
    %s93 = sphi 0, %s95
    %s96 = sphi 0, %s93
    %s97 = sphi 0, %s96
    %s113 = sphi 0, %s97
    %s119 = sphi 0, %s121
    %s122 = sphi 0, %s119
    %s123 = sphi 0, %s122
    %s139 = sphi 0, %s123
  $region4: #{conv_bn_relu.1} parent=0 // loop_header_branch
    %13 = sbr.rel (%p11) target = $region8
  $region5: #{conv_bn_relu.1} parent=0 // loop_body
    %s15 = ssub.s32 %s10, 1
    %s16 = ssub.s32 %s10, 2
    %s17 = sadd.s32 %s10, 1
    %s18 = ssub.s32 %s10, %s17
    %p19 = scmp.eq.s32.totalorder %s18, 0
    %s21 = sadd.s32 %s20, 1
    %s22 = scalar_select %p19, %s20, %s21
    %p25 = pneg %p19
    %p26 = scmp.eq.s32.totalorder %s10, 3
    %p27 = por %p25, %p26
    %p28 = scmp.ne.s32.totalorder %s20, %s23
    %p29 = scmp.eq.s32.totalorder %s10, 0
    %p30 = por %p28, %p29
    %p31 = scmp.ne.s32.totalorder %s20, %s23
    %p32 = scmp.eq.s32.totalorder %s15, 3
    %p33 = por %p31, %p32
    %p34 = scmp.ne.s32.totalorder %s23, %s24
    %p35 = scmp.eq.s32.totalorder %s15, 0
    %p36 = por %p34, %p35
    %p37 = scmp.ne.s32.totalorder %s23, %s24
    %p38 = scmp.eq.s32.totalorder %s16, 3
    %p39 = por %p37, %p38
    %p41 = scmp.ne.s32.totalorder %s24, %s40
    %p42 = scmp.eq.s32.totalorder %s16, 0
    %p43 = por %p41, %p42
    %s45 = sadd.s32 %s44, 1
    %p48 = scmp.eq.s32.totalorder %s10, 3
    %p49 = scmp.ne.s32.totalorder %s44, %s46
    %p50 = scmp.eq.s32.totalorder %s10, 0
    %p51 = por %p49, %p50
    %p52 = scmp.ne.s32.totalorder %s44, %s46
    %p53 = scmp.eq.s32.totalorder %s15, 3
    %p54 = por %p52, %p53
    %p55 = scmp.ne.s32.totalorder %s46, %s47
    %p56 = scmp.eq.s32.totalorder %s15, 0
    %p57 = por %p55, %p56
    %p58 = scmp.ne.s32.totalorder %s46, %s47
    %p59 = scmp.eq.s32.totalorder %s16, 3
    %p60 = por %p58, %p59
    %p62 = scmp.ne.s32.totalorder %s47, %s61
    %p63 = scmp.eq.s32.totalorder %s16, 0
    %p64 = por %p62, %p63
    %s65 = ssub.s32 %s10, %s17
    %p66 = scmp.eq.s32.totalorder %s65, 0
    %s68 = sadd.s32 %s67, 1
    %s69 = scalar_select %p66, %s67, %s68
    %p72 = pneg %p66
    %p73 = scmp.eq.s32.totalorder %s10, 3
    %p74 = por %p72, %p73
    %p75 = scmp.ne.s32.totalorder %s67, %s70
    %p76 = scmp.eq.s32.totalorder %s10, 0
    %p77 = por %p75, %p76
    %p78 = scmp.ne.s32.totalorder %s67, %s70
    %p79 = scmp.eq.s32.totalorder %s15, 3
    %p80 = por %p78, %p79
    %p81 = scmp.ne.s32.totalorder %s70, %s71
    %p82 = scmp.eq.s32.totalorder %s15, 0
    %p83 = por %p81, %p82
    %p84 = scmp.ne.s32.totalorder %s70, %s71
    %p85 = scmp.eq.s32.totalorder %s16, 3
    %p86 = por %p84, %p85
    %p88 = scmp.ne.s32.totalorder %s71, %s87
    %p89 = scmp.eq.s32.totalorder %s16, 0
    %p90 = por %p88, %p89
    %s91 = ssub.s32 %s10, %s17
    %p92 = scmp.eq.s32.totalorder %s91, 0
    %s94 = sadd.s32 %s93, 1
    %s95 = scalar_select %p92, %s93, %s94
    %p98 = pneg %p92
    %p99 = scmp.eq.s32.totalorder %s10, 3
    %p100 = por %p98, %p99
    %p101 = scmp.ne.s32.totalorder %s93, %s96
    %p102 = scmp.eq.s32.totalorder %s10, 0
    %p103 = por %p101, %p102
    %p104 = scmp.ne.s32.totalorder %s93, %s96
    %p105 = scmp.eq.s32.totalorder %s15, 3
    %p106 = por %p104, %p105
    %p107 = scmp.ne.s32.totalorder %s96, %s97
    %p108 = scmp.eq.s32.totalorder %s15, 0
    %p109 = por %p107, %p108
    %p110 = scmp.ne.s32.totalorder %s96, %s97
    %p111 = scmp.eq.s32.totalorder %s16, 3
    %p112 = por %p110, %p111
    %p114 = scmp.ne.s32.totalorder %s97, %s113
    %p115 = scmp.eq.s32.totalorder %s16, 0
    %p116 = por %p114, %p115
    %s117 = ssub.s32 %s10, %s17
    %p118 = scmp.eq.s32.totalorder %s117, 0
    %s120 = sadd.s32 %s119, 1
    %s121 = scalar_select %p118, %s119, %s120
    %p124 = pneg %p118
    %p125 = scmp.eq.s32.totalorder %s10, 3
    %p126 = por %p124, %p125
    %p127 = scmp.ne.s32.totalorder %s119, %s122
    %p128 = scmp.eq.s32.totalorder %s10, 0
    %p129 = por %p127, %p128
    %p130 = scmp.ne.s32.totalorder %s119, %s122
    %p131 = scmp.eq.s32.totalorder %s15, 3
    %p132 = por %p130, %p131
    %p133 = scmp.ne.s32.totalorder %s122, %s123
    %p134 = scmp.eq.s32.totalorder %s15, 0
    %p135 = por %p133, %p134
    %p136 = scmp.ne.s32.totalorder %s122, %s123
    %p137 = scmp.eq.s32.totalorder %s16, 3
    %p138 = por %p136, %p137
    %p140 = scmp.ne.s32.totalorder %s123, %s139
    %p141 = scmp.eq.s32.totalorder %s16, 0
    %p142 = por %p140, %p141
    %p143 = scmp.le.s32.totalorder 1, %s10
    %p144 = scmp.lt.s32.totalorder %s10, 5
    %p145 = pnand %p143, %p144
    %p146 = pneg %p145
    // Predicated region
    $region9: #{conv_bn_relu.1} parent=5 // pred_check
      _
    $region10: #{conv_bn_relu.1} parent=5 // pred_check_branch
      %148 = sbr.rel (%p145) target = $region12
    $region11: #{conv_bn_relu.1} parent=5 // pred_region
      %s149 = ssub.s32 %s10, 1
      // Predicated region
      $region13: #{conv_bn_relu.1} parent=11 // pred_check
        %p150 = pneg %p57
      $region14: #{conv_bn_relu.1} parent=11 // pred_check_branch
        %152 = sbr.rel (%p150) target = $region16
      $region15: #{conv_bn_relu.1} parent=11 // pred_region
        _
      $region16: #{conv_bn_relu.1} parent=11 // pred_fallthru
        _
    $region12: #{conv_bn_relu.1} parent=5 // pred_fallthru
      _
    %p153 = scmp.lt.s32.totalorder %s10, 4
    // Predicated region
    $region17: #{conv_bn_relu.1} parent=5 // pred_check
      %p154 = pneg %p153
    $region18: #{conv_bn_relu.1} parent=5 // pred_check_branch
      %156 = sbr.rel (%p154) target = $region20
    $region19: #{conv_bn_relu.1} parent=5 // pred_region
      // Predicated region
      $region21: #{conv_bn_relu.1} parent=19 // pred_check
        %p157 = pneg %p30
      $region22: #{conv_bn_relu.1} parent=19 // pred_check_branch
        %159 = sbr.rel (%p157) target = $region24
      $region23: #{conv_bn_relu.1} parent=19 // pred_region
        %s160 = smul.u32 32, %s10
        %p161 = scmp.lt.s32.totalorder %s160, 127
        %s162 = scalar_select %p161, %s160, 127
        %s163 = smul.addr %s162, 8
        %s164 = smul.addr %s163, 8
        %s165 = scalar_lea.vmem %s0, %s164
        %s166 = smul.u32 32, %s10
      $region24: #{conv_bn_relu.1} parent=19 // pred_fallthru
        _
      // Predicated region
      $region25: #{conv_bn_relu.1} parent=19 // pred_check
        %p167 = pneg %p77
      $region26: #{conv_bn_relu.1} parent=19 // pred_check_branch
        %169 = sbr.rel (%p167) target = $region28
      $region27: #{conv_bn_relu.1} parent=19 // pred_region
        %s170 = smul.u32 32, %s10
        %p171 = scmp.lt.s32.totalorder %s170, 127
        %s172 = scalar_select %p171, %s170, 127
        %s173 = smul.addr %s172, 8
        %s174 = scalar_lea.vmem %s2, %s173
        %s175 = smul.u32 32, %s10
      $region28: #{conv_bn_relu.1} parent=19 // pred_fallthru
        _
      // Predicated region
      $region29: #{conv_bn_relu.1} parent=19 // pred_check
        %p176 = pneg %p103
      $region30: #{conv_bn_relu.1} parent=19 // pred_check_branch
        %178 = sbr.rel (%p176) target = $region32
      $region31: #{conv_bn_relu.1} parent=19 // pred_region
        %s179 = smul.u32 32, %s10
        %p180 = scmp.lt.s32.totalorder %s179, 127
        %s181 = scalar_select %p180, %s179, 127
        %s182 = smul.addr %s181, 8
        %s183 = scalar_lea.vmem %s3, %s182
        %s184 = smul.u32 32, %s10
      $region32: #{conv_bn_relu.1} parent=19 // pred_fallthru
        _
    $region20: #{conv_bn_relu.1} parent=5 // pred_fallthru
      _
    %p185 = scmp.le.s32.totalorder 1, %s10
    %p186 = scmp.lt.s32.totalorder %s10, 5
    %p187 = pnand %p185, %p186
    %p188 = pneg %p187
    // Predicated region
    $region33: #{conv_bn_relu.1} parent=5 // pred_check
      _
    $region34: #{conv_bn_relu.1} parent=5 // pred_check_branch
      %190 = sbr.rel (%p187) target = $region36
    $region35: #{conv_bn_relu.1} parent=5 // pred_region
      %s191 = ssub.s32 %s10, 1
      %s192 = smul.u32 32, %s15
      %p193 = scmp.lt.s32.totalorder %s192, 127
      %s194 = scalar_select %p193, %s192, 127
      %s195 = smul.addr %s194, 8
      %s196 = smul.addr %s195, 8
      %s197 = scalar_lea.vmem %s0, %s196
      %p198 = pneg %p36
      %p199 = pneg %p33
      %p200 = pneg %p57
      %p201 = pneg %p54
      %s202 = smul.u32 32, %s15
      %p203 = scmp.lt.s32.totalorder %s202, 127
      %s204 = scalar_select %p203, %s202, 127
      %s205 = smul.addr %s204, 8
      %s206 = scalar_lea.vmem %s2, %s205
      %p207 = pneg %p83
      %p208 = pneg %p80
      %s209 = smul.u32 32, %s15
      %p210 = scmp.lt.s32.totalorder %s209, 127
      %s211 = scalar_select %p210, %s209, 127
      %s212 = smul.addr %s211, 8
      %s213 = scalar_lea.vmem %s3, %s212
      %p214 = pneg %p109
      %p215 = pneg %p106
      %p216 = pneg %p135
      %p217 = pneg %p132
      %s218 = smul.u32 32, %s15
      %p219 = scmp.lt.s32.totalorder %s218, 127
      %s220 = scalar_select %p219, %s218, 127
      %s221 = smul.addr %s220, 2
      %s222 = smul.addr %s221, 8
      %s223 = scalar_lea.vmem %s4, %s222
      %s224 = smul.u32 32, %s15
      %p225 = scmp.lt.s32.totalorder %s224, 127
      %s226 = scalar_select %p225, %s224, 127
      %s227 = smul.addr %s226, 8
      %s228 = smul.addr %s227, 8
      %s229 = scalar_lea.vmem %s0, %s228
      %s230 = smul.u32 32, %s15
      %s231 = smul.u32 32, %s15
      %p232 = scmp.lt.s32.totalorder %s231, 127
      %s233 = scalar_select %p232, %s231, 127
      %s234 = smul.addr %s233, 8
      %s235 = scalar_lea.vmem %s2, %s234
      %s236 = smul.u32 32, %s15
      %s237 = smul.u32 32, %s15
      %p238 = scmp.lt.s32.totalorder %s237, 127
      %s239 = scalar_select %p238, %s237, 127
      %s240 = smul.addr %s239, 8
      %s241 = scalar_lea.vmem %s3, %s240
      %s242 = smul.u32 32, %s15
      %s243 = smul.u32 32, %s15
      %p244 = scmp.lt.s32.totalorder %s243, 127
      %s245 = scalar_select %p244, %s243, 127
      %s246 = smul.addr %s245, 2
      %s247 = smul.addr %s246, 8
      %s248 = scalar_lea.vmem %s4, %s247
      %s249 = smul.u32 32, %s15
      %v250 = vld [vmem:[%s229] sm:$0xff]
      %v251 = vld [vmem:[%s229 + $0x8] sm:$0xff]
      %v252 = vld [vmem:[%s229 + $0x10] sm:$0xff]
      %v253 = vld [vmem:[%s229 + $0x18] sm:$0xff]
      %v254 = vld [vmem:[%s229 + $0x20] sm:$0xff]
      %v255 = vld [vmem:[%s229 + $0x28] sm:$0xff]
      %v256 = vld [vmem:[%s229 + $0x30] sm:$0xff]
      %v257 = vld [vmem:[%s229 + $0x38] sm:$0xff]
      %v258 = vld [vmem:[%s229 + $0x40] sm:$0xff]
      %v259 = vld [vmem:[%s229 + $0x48] sm:$0xff]
      %v260 = vld [vmem:[%s229 + $0x50] sm:$0xff]
      %v261 = vld [vmem:[%s229 + $0x58] sm:$0xff]
      %v262 = vld [vmem:[%s229 + $0x60] sm:$0xff]
      %v263 = vld [vmem:[%s229 + $0x68] sm:$0xff]
      %v264 = vld [vmem:[%s229 + $0x70] sm:$0xff]
      %v265 = vld [vmem:[%s229 + $0x78] sm:$0xff]
      %v266 = vld [vmem:[%s229 + $0x80] sm:$0xff]
      %v267 = vld [vmem:[%s229 + $0x88] sm:$0xff]
      %v268 = vld [vmem:[%s229 + $0x90] sm:$0xff]
      %v269 = vld [vmem:[%s229 + $0x98] sm:$0xff]
      %v270 = vld [vmem:[%s229 + $0xa0] sm:$0xff]
      %v271 = vld [vmem:[%s229 + $0xa8] sm:$0xff]
      %v272 = vld [vmem:[%s229 + $0xb0] sm:$0xff]
      %v273 = vld [vmem:[%s229 + $0xb8] sm:$0xff]
      %v274 = vld [vmem:[%s229 + $0xc0] sm:$0xff]
      %v275 = vld [vmem:[%s229 + $0xc8] sm:$0xff]
      %v276 = vld [vmem:[%s229 + $0xd0] sm:$0xff]
      %v277 = vld [vmem:[%s229 + $0xd8] sm:$0xff]
      %v278 = vld [vmem:[%s229 + $0xe0] sm:$0xff]
      %v279 = vld [vmem:[%s229 + $0xe8] sm:$0xff]
      %v280 = vld [vmem:[%s229 + $0xf0] sm:$0xff]
      %v281 = vld [vmem:[%s229 + $0xf8] sm:$0xff]
      %v282 = vld [vmem:[%s229 + $0x100] sm:$0xff]
      %v283 = vld [vmem:[%s229 + $0x108] sm:$0xff]
      %v284 = vld [vmem:[%s229 + $0x110] sm:$0xff]
      %v285 = vld [vmem:[%s229 + $0x118] sm:$0xff]
      %v286 = vld [vmem:[%s229 + $0x120] sm:$0xff]
      %v287 = vld [vmem:[%s229 + $0x128] sm:$0xff]
      %v288 = vld [vmem:[%s229 + $0x130] sm:$0xff]
      %v289 = vld [vmem:[%s229 + $0x138] sm:$0xff]
      %v290 = vld [vmem:[%s229 + $0x140] sm:$0xff]
      %v291 = vld [vmem:[%s229 + $0x148] sm:$0xff]
      %v292 = vld [vmem:[%s229 + $0x150] sm:$0xff]
      %v293 = vld [vmem:[%s229 + $0x158] sm:$0xff]
      %v294 = vld [vmem:[%s229 + $0x160] sm:$0xff]
      %v295 = vld [vmem:[%s229 + $0x168] sm:$0xff]
      %v296 = vld [vmem:[%s229 + $0x170] sm:$0xff]
      %v297 = vld [vmem:[%s229 + $0x178] sm:$0xff]
      %v298 = vld [vmem:[%s229 + $0x180] sm:$0xff]
      %v299 = vld [vmem:[%s229 + $0x188] sm:$0xff]
      %v300 = vld [vmem:[%s229 + $0x190] sm:$0xff]
      %v301 = vld [vmem:[%s229 + $0x198] sm:$0xff]
      %v302 = vld [vmem:[%s229 + $0x1a0] sm:$0xff]
      %v303 = vld [vmem:[%s229 + $0x1a8] sm:$0xff]
      %v304 = vld [vmem:[%s229 + $0x1b0] sm:$0xff]
      %v305 = vld [vmem:[%s229 + $0x1b8] sm:$0xff]
      %v306 = vld [vmem:[%s229 + $0x1c0] sm:$0xff]
      %v307 = vld [vmem:[%s229 + $0x1c8] sm:$0xff]
      %v308 = vld [vmem:[%s229 + $0x1d0] sm:$0xff]
      %v309 = vld [vmem:[%s229 + $0x1d8] sm:$0xff]
      %v310 = vld [vmem:[%s229 + $0x1e0] sm:$0xff]
      %v311 = vld [vmem:[%s229 + $0x1e8] sm:$0xff]
      %v312 = vld [vmem:[%s229 + $0x1f0] sm:$0xff]
      %v313 = vld [vmem:[%s229 + $0x1f8] sm:$0xff]
      %v314 = vld [vmem:[%s229 + $0x200] sm:$0xff]
      %v315 = vld [vmem:[%s229 + $0x208] sm:$0xff]
      %v316 = vld [vmem:[%s229 + $0x210] sm:$0xff]
      %v317 = vld [vmem:[%s229 + $0x218] sm:$0xff]
      %v318 = vld [vmem:[%s229 + $0x220] sm:$0xff]
      %v319 = vld [vmem:[%s229 + $0x228] sm:$0xff]
      %v320 = vld [vmem:[%s229 + $0x230] sm:$0xff]
      %v321 = vld [vmem:[%s229 + $0x238] sm:$0xff]
      %v322 = vld [vmem:[%s229 + $0x240] sm:$0xff]
      %v323 = vld [vmem:[%s229 + $0x248] sm:$0xff]
      %v324 = vld [vmem:[%s229 + $0x250] sm:$0xff]
      %v325 = vld [vmem:[%s229 + $0x258] sm:$0xff]
      %v326 = vld [vmem:[%s229 + $0x260] sm:$0xff]
      %v327 = vld [vmem:[%s229 + $0x268] sm:$0xff]
      %v328 = vld [vmem:[%s229 + $0x270] sm:$0xff]
      %v329 = vld [vmem:[%s229 + $0x278] sm:$0xff]
      %v330 = vld [vmem:[%s229 + $0x280] sm:$0xff]
      %v331 = vld [vmem:[%s229 + $0x288] sm:$0xff]
      %v332 = vld [vmem:[%s229 + $0x290] sm:$0xff]
      %v333 = vld [vmem:[%s229 + $0x298] sm:$0xff]
      %v334 = vld [vmem:[%s229 + $0x2a0] sm:$0xff]
      %v335 = vld [vmem:[%s229 + $0x2a8] sm:$0xff]
      %v336 = vld [vmem:[%s229 + $0x2b0] sm:$0xff]
      %v337 = vld [vmem:[%s229 + $0x2b8] sm:$0xff]
      %v338 = vld [vmem:[%s229 + $0x2c0] sm:$0xff]
      %v339 = vld [vmem:[%s229 + $0x2c8] sm:$0xff]
      %v340 = vld [vmem:[%s229 + $0x2d0] sm:$0xff]
      %v341 = vld [vmem:[%s229 + $0x2d8] sm:$0xff]
      %v342 = vld [vmem:[%s229 + $0x2e0] sm:$0xff]
      %v343 = vld [vmem:[%s229 + $0x2e8] sm:$0xff]
      %v344 = vld [vmem:[%s229 + $0x2f0] sm:$0xff]
      %v345 = vld [vmem:[%s229 + $0x2f8] sm:$0xff]
      %v346 = vld [vmem:[%s229 + $0x300] sm:$0xff]
      %v347 = vld [vmem:[%s229 + $0x308] sm:$0xff]
      %v348 = vld [vmem:[%s229 + $0x310] sm:$0xff]
      %v349 = vld [vmem:[%s229 + $0x318] sm:$0xff]
      %v350 = vld [vmem:[%s229 + $0x320] sm:$0xff]
      %v351 = vld [vmem:[%s229 + $0x328] sm:$0xff]
      %v352 = vld [vmem:[%s229 + $0x330] sm:$0xff]
      %v353 = vld [vmem:[%s229 + $0x338] sm:$0xff]
      %v354 = vld [vmem:[%s229 + $0x340] sm:$0xff]
      %v355 = vld [vmem:[%s229 + $0x348] sm:$0xff]
      %v356 = vld [vmem:[%s229 + $0x350] sm:$0xff]
      %v357 = vld [vmem:[%s229 + $0x358] sm:$0xff]
      %v358 = vld [vmem:[%s229 + $0x360] sm:$0xff]
      %v359 = vld [vmem:[%s229 + $0x368] sm:$0xff]
      %v360 = vld [vmem:[%s229 + $0x370] sm:$0xff]
      %v361 = vld [vmem:[%s229 + $0x378] sm:$0xff]
      %v362 = vld [vmem:[%s229 + $0x380] sm:$0xff]
      %v363 = vld [vmem:[%s229 + $0x388] sm:$0xff]
      %v364 = vld [vmem:[%s229 + $0x390] sm:$0xff]
      %v365 = vld [vmem:[%s229 + $0x398] sm:$0xff]
      %v366 = vld [vmem:[%s229 + $0x3a0] sm:$0xff]
      %v367 = vld [vmem:[%s229 + $0x3a8] sm:$0xff]
      %v368 = vld [vmem:[%s229 + $0x3b0] sm:$0xff]
      %v369 = vld [vmem:[%s229 + $0x3b8] sm:$0xff]
      %v370 = vld [vmem:[%s229 + $0x3c0] sm:$0xff]
      %v371 = vld [vmem:[%s229 + $0x3c8] sm:$0xff]
      %v372 = vld [vmem:[%s229 + $0x3d0] sm:$0xff]
      %v373 = vld [vmem:[%s229 + $0x3d8] sm:$0xff]
      %v374 = vld [vmem:[%s229 + $0x3e0] sm:$0xff]
      %v375 = vld [vmem:[%s229 + $0x3e8] sm:$0xff]
      %v376 = vld [vmem:[%s229 + $0x3f0] sm:$0xff]
      %v377 = vld [vmem:[%s229 + $0x3f8] sm:$0xff]
      %v378 = vld [vmem:[%s229 + $0x400] sm:$0xff]
      %v379 = vld [vmem:[%s229 + $0x408] sm:$0xff]
      %v380 = vld [vmem:[%s229 + $0x410] sm:$0xff]
      %v381 = vld [vmem:[%s229 + $0x418] sm:$0xff]
      %v382 = vld [vmem:[%s229 + $0x420] sm:$0xff]
      %v383 = vld [vmem:[%s229 + $0x428] sm:$0xff]
      %v384 = vld [vmem:[%s229 + $0x430] sm:$0xff]
      %v385 = vld [vmem:[%s229 + $0x438] sm:$0xff]
      %v386 = vld [vmem:[%s229 + $0x440] sm:$0xff]
      %v387 = vld [vmem:[%s229 + $0x448] sm:$0xff]
      %v388 = vld [vmem:[%s229 + $0x450] sm:$0xff]
      %v389 = vld [vmem:[%s229 + $0x458] sm:$0xff]
      %v390 = vld [vmem:[%s229 + $0x460] sm:$0xff]
      %v391 = vld [vmem:[%s229 + $0x468] sm:$0xff]
      %v392 = vld [vmem:[%s229 + $0x470] sm:$0xff]
      %v393 = vld [vmem:[%s229 + $0x478] sm:$0xff]
      %v394 = vld [vmem:[%s229 + $0x480] sm:$0xff]
      %v395 = vld [vmem:[%s229 + $0x488] sm:$0xff]
      %v396 = vld [vmem:[%s229 + $0x490] sm:$0xff]
      %v397 = vld [vmem:[%s229 + $0x498] sm:$0xff]
      %v398 = vld [vmem:[%s229 + $0x4a0] sm:$0xff]
      %v399 = vld [vmem:[%s229 + $0x4a8] sm:$0xff]
      %v400 = vld [vmem:[%s229 + $0x4b0] sm:$0xff]
      %v401 = vld [vmem:[%s229 + $0x4b8] sm:$0xff]
      %v402 = vld [vmem:[%s229 + $0x4c0] sm:$0xff]
      %v403 = vld [vmem:[%s229 + $0x4c8] sm:$0xff]
      %v404 = vld [vmem:[%s229 + $0x4d0] sm:$0xff]
      %v405 = vld [vmem:[%s229 + $0x4d8] sm:$0xff]
      %v406 = vld [vmem:[%s229 + $0x4e0] sm:$0xff]
      %v407 = vld [vmem:[%s229 + $0x4e8] sm:$0xff]
      %v408 = vld [vmem:[%s229 + $0x4f0] sm:$0xff]
      %v409 = vld [vmem:[%s229 + $0x4f8] sm:$0xff]
      %v410 = vld [vmem:[%s229 + $0x500] sm:$0xff]
      %v411 = vld [vmem:[%s229 + $0x508] sm:$0xff]
      %v412 = vld [vmem:[%s229 + $0x510] sm:$0xff]
      %v413 = vld [vmem:[%s229 + $0x518] sm:$0xff]
      %v414 = vld [vmem:[%s229 + $0x520] sm:$0xff]
      %v415 = vld [vmem:[%s229 + $0x528] sm:$0xff]
      %v416 = vld [vmem:[%s229 + $0x530] sm:$0xff]
      %v417 = vld [vmem:[%s229 + $0x538] sm:$0xff]
      %v418 = vld [vmem:[%s229 + $0x540] sm:$0xff]
      %v419 = vld [vmem:[%s229 + $0x548] sm:$0xff]
      %v420 = vld [vmem:[%s229 + $0x550] sm:$0xff]
      %v421 = vld [vmem:[%s229 + $0x558] sm:$0xff]
      %v422 = vld [vmem:[%s229 + $0x560] sm:$0xff]
      %v423 = vld [vmem:[%s229 + $0x568] sm:$0xff]
      %v424 = vld [vmem:[%s229 + $0x570] sm:$0xff]
      %v425 = vld [vmem:[%s229 + $0x578] sm:$0xff]
      %v426 = vld [vmem:[%s229 + $0x580] sm:$0xff]
      %v427 = vld [vmem:[%s229 + $0x588] sm:$0xff]
      %v428 = vld [vmem:[%s229 + $0x590] sm:$0xff]
      %v429 = vld [vmem:[%s229 + $0x598] sm:$0xff]
      %v430 = vld [vmem:[%s229 + $0x5a0] sm:$0xff]
      %v431 = vld [vmem:[%s229 + $0x5a8] sm:$0xff]
      %v432 = vld [vmem:[%s229 + $0x5b0] sm:$0xff]
      %v433 = vld [vmem:[%s229 + $0x5b8] sm:$0xff]
      %v434 = vld [vmem:[%s229 + $0x5c0] sm:$0xff]
      %v435 = vld [vmem:[%s229 + $0x5c8] sm:$0xff]
      %v436 = vld [vmem:[%s229 + $0x5d0] sm:$0xff]
      %v437 = vld [vmem:[%s229 + $0x5d8] sm:$0xff]
      %v438 = vld [vmem:[%s229 + $0x5e0] sm:$0xff]
      %v439 = vld [vmem:[%s229 + $0x5e8] sm:$0xff]
      %v440 = vld [vmem:[%s229 + $0x5f0] sm:$0xff]
      %v441 = vld [vmem:[%s229 + $0x5f8] sm:$0xff]
      %v442 = vld [vmem:[%s229 + $0x600] sm:$0xff]
      %v443 = vld [vmem:[%s229 + $0x608] sm:$0xff]
      %v444 = vld [vmem:[%s229 + $0x610] sm:$0xff]
      %v445 = vld [vmem:[%s229 + $0x618] sm:$0xff]
      %v446 = vld [vmem:[%s229 + $0x620] sm:$0xff]
      %v447 = vld [vmem:[%s229 + $0x628] sm:$0xff]
      %v448 = vld [vmem:[%s229 + $0x630] sm:$0xff]
      %v449 = vld [vmem:[%s229 + $0x638] sm:$0xff]
      %v450 = vld [vmem:[%s229 + $0x640] sm:$0xff]
      %v451 = vld [vmem:[%s229 + $0x648] sm:$0xff]
      %v452 = vld [vmem:[%s229 + $0x650] sm:$0xff]
      %v453 = vld [vmem:[%s229 + $0x658] sm:$0xff]
      %v454 = vld [vmem:[%s229 + $0x660] sm:$0xff]
      %v455 = vld [vmem:[%s229 + $0x668] sm:$0xff]
      %v456 = vld [vmem:[%s229 + $0x670] sm:$0xff]
      %v457 = vld [vmem:[%s229 + $0x678] sm:$0xff]
      %v458 = vld [vmem:[%s229 + $0x680] sm:$0xff]
      %v459 = vld [vmem:[%s229 + $0x688] sm:$0xff]
      %v460 = vld [vmem:[%s229 + $0x690] sm:$0xff]
      %v461 = vld [vmem:[%s229 + $0x698] sm:$0xff]
      %v462 = vld [vmem:[%s229 + $0x6a0] sm:$0xff]
      %v463 = vld [vmem:[%s229 + $0x6a8] sm:$0xff]
      %v464 = vld [vmem:[%s229 + $0x6b0] sm:$0xff]
      %v465 = vld [vmem:[%s229 + $0x6b8] sm:$0xff]
      %v466 = vld [vmem:[%s229 + $0x6c0] sm:$0xff]
      %v467 = vld [vmem:[%s229 + $0x6c8] sm:$0xff]
      %v468 = vld [vmem:[%s229 + $0x6d0] sm:$0xff]
      %v469 = vld [vmem:[%s229 + $0x6d8] sm:$0xff]
      %v470 = vld [vmem:[%s229 + $0x6e0] sm:$0xff]
      %v471 = vld [vmem:[%s229 + $0x6e8] sm:$0xff]
      %v472 = vld [vmem:[%s229 + $0x6f0] sm:$0xff]
      %v473 = vld [vmem:[%s229 + $0x6f8] sm:$0xff]
      %v474 = vld [vmem:[%s229 + $0x700] sm:$0xff]
      %v475 = vld [vmem:[%s229 + $0x708] sm:$0xff]
      %v476 = vld [vmem:[%s229 + $0x710] sm:$0xff]
      %v477 = vld [vmem:[%s229 + $0x718] sm:$0xff]
      %v478 = vld [vmem:[%s229 + $0x720] sm:$0xff]
      %v479 = vld [vmem:[%s229 + $0x728] sm:$0xff]
      %v480 = vld [vmem:[%s229 + $0x730] sm:$0xff]
      %v481 = vld [vmem:[%s229 + $0x738] sm:$0xff]
      %v482 = vld [vmem:[%s229 + $0x740] sm:$0xff]
      %v483 = vld [vmem:[%s229 + $0x748] sm:$0xff]
      %v484 = vld [vmem:[%s229 + $0x750] sm:$0xff]
      %v485 = vld [vmem:[%s229 + $0x758] sm:$0xff]
      %v486 = vld [vmem:[%s229 + $0x760] sm:$0xff]
      %v487 = vld [vmem:[%s229 + $0x768] sm:$0xff]
      %v488 = vld [vmem:[%s229 + $0x770] sm:$0xff]
      %v489 = vld [vmem:[%s229 + $0x778] sm:$0xff]
      %v490 = vld [vmem:[%s229 + $0x780] sm:$0xff]
      %v491 = vld [vmem:[%s229 + $0x788] sm:$0xff]
      %v492 = vld [vmem:[%s229 + $0x790] sm:$0xff]
      %v493 = vld [vmem:[%s229 + $0x798] sm:$0xff]
      %v494 = vld [vmem:[%s229 + $0x7a0] sm:$0xff]
      %v495 = vld [vmem:[%s229 + $0x7a8] sm:$0xff]
      %v496 = vld [vmem:[%s229 + $0x7b0] sm:$0xff]
      %v497 = vld [vmem:[%s229 + $0x7b8] sm:$0xff]
      %v498 = vld [vmem:[%s229 + $0x7c0] sm:$0xff]
      %v499 = vld [vmem:[%s229 + $0x7c8] sm:$0xff]
      %v500 = vld [vmem:[%s229 + $0x7d0] sm:$0xff]
      %v501 = vld [vmem:[%s229 + $0x7d8] sm:$0xff]
      %v502 = vld [vmem:[%s229 + $0x7e0] sm:$0xff]
      %v503 = vld [vmem:[%s229 + $0x7e8] sm:$0xff]
      %v504 = vld [vmem:[%s229 + $0x7f0] sm:$0xff]
      %v505 = vld [vmem:[%s229 + $0x7f8] sm:$0xff]
      %v506 = vpack.c.bf16 %v258, %v250
      %v507 = vpack.c.bf16 %v259, %v251
      %v508 = vpack.c.bf16 %v260, %v252
      %v509 = vpack.c.bf16 %v261, %v253
      %v510 = vpack.c.bf16 %v262, %v254
      %v511 = vpack.c.bf16 %v263, %v255
      %v512 = vpack.c.bf16 %v264, %v256
      %v513 = vpack.c.bf16 %v265, %v257
      %v514 = vpack.c.bf16 %v274, %v266
      %v515 = vpack.c.bf16 %v275, %v267
      %v516 = vpack.c.bf16 %v276, %v268
      %v517 = vpack.c.bf16 %v277, %v269
      %v518 = vpack.c.bf16 %v278, %v270
      %v519 = vpack.c.bf16 %v279, %v271
      %v520 = vpack.c.bf16 %v280, %v272
      %v521 = vpack.c.bf16 %v281, %v273
      %v522 = vpack.c.bf16 %v290, %v282
      %v523 = vpack.c.bf16 %v291, %v283
      %v524 = vpack.c.bf16 %v292, %v284
      %v525 = vpack.c.bf16 %v293, %v285
      %v526 = vpack.c.bf16 %v294, %v286
      %v527 = vpack.c.bf16 %v295, %v287
      %v528 = vpack.c.bf16 %v296, %v288
      %v529 = vpack.c.bf16 %v297, %v289
      %v530 = vpack.c.bf16 %v306, %v298
      %v531 = vpack.c.bf16 %v307, %v299
      %v532 = vpack.c.bf16 %v308, %v300
      %v533 = vpack.c.bf16 %v309, %v301
      %v534 = vpack.c.bf16 %v310, %v302
      %v535 = vpack.c.bf16 %v311, %v303
      %v536 = vpack.c.bf16 %v312, %v304
      %v537 = vpack.c.bf16 %v313, %v305
      %v538 = vpack.c.bf16 %v322, %v314
      %v539 = vpack.c.bf16 %v323, %v315
      %v540 = vpack.c.bf16 %v324, %v316
      %v541 = vpack.c.bf16 %v325, %v317
      %v542 = vpack.c.bf16 %v326, %v318
      %v543 = vpack.c.bf16 %v327, %v319
      %v544 = vpack.c.bf16 %v328, %v320
      %v545 = vpack.c.bf16 %v329, %v321
      %v546 = vpack.c.bf16 %v338, %v330
      %v547 = vpack.c.bf16 %v339, %v331
      %v548 = vpack.c.bf16 %v340, %v332
      %v549 = vpack.c.bf16 %v341, %v333
      %v550 = vpack.c.bf16 %v342, %v334
      %v551 = vpack.c.bf16 %v343, %v335
      %v552 = vpack.c.bf16 %v344, %v336
      %v553 = vpack.c.bf16 %v345, %v337
      %v554 = vpack.c.bf16 %v354, %v346
      %v555 = vpack.c.bf16 %v355, %v347
      %v556 = vpack.c.bf16 %v356, %v348
      %v557 = vpack.c.bf16 %v357, %v349
      %v558 = vpack.c.bf16 %v358, %v350
      %v559 = vpack.c.bf16 %v359, %v351
      %v560 = vpack.c.bf16 %v360, %v352
      %v561 = vpack.c.bf16 %v361, %v353
      %v562 = vpack.c.bf16 %v370, %v362
      %v563 = vpack.c.bf16 %v371, %v363
      %v564 = vpack.c.bf16 %v372, %v364
      %v565 = vpack.c.bf16 %v373, %v365
      %v566 = vpack.c.bf16 %v374, %v366
      %v567 = vpack.c.bf16 %v375, %v367
      %v568 = vpack.c.bf16 %v376, %v368
      %v569 = vpack.c.bf16 %v377, %v369
      %v570 = vpack.c.bf16 %v386, %v378
      %v571 = vpack.c.bf16 %v387, %v379
      %v572 = vpack.c.bf16 %v388, %v380
      %v573 = vpack.c.bf16 %v389, %v381
      %v574 = vpack.c.bf16 %v390, %v382
      %v575 = vpack.c.bf16 %v391, %v383
      %v576 = vpack.c.bf16 %v392, %v384
      %v577 = vpack.c.bf16 %v393, %v385
      %v578 = vpack.c.bf16 %v402, %v394
      %v579 = vpack.c.bf16 %v403, %v395
      %v580 = vpack.c.bf16 %v404, %v396
      %v581 = vpack.c.bf16 %v405, %v397
      %v582 = vpack.c.bf16 %v406, %v398
      %v583 = vpack.c.bf16 %v407, %v399
      %v584 = vpack.c.bf16 %v408, %v400
      %v585 = vpack.c.bf16 %v409, %v401
      %v586 = vpack.c.bf16 %v418, %v410
      %v587 = vpack.c.bf16 %v419, %v411
      %v588 = vpack.c.bf16 %v420, %v412
      %v589 = vpack.c.bf16 %v421, %v413
      %v590 = vpack.c.bf16 %v422, %v414
      %v591 = vpack.c.bf16 %v423, %v415
      %v592 = vpack.c.bf16 %v424, %v416
      %v593 = vpack.c.bf16 %v425, %v417
      %v594 = vpack.c.bf16 %v434, %v426
      %v595 = vpack.c.bf16 %v435, %v427
      %v596 = vpack.c.bf16 %v436, %v428
      %v597 = vpack.c.bf16 %v437, %v429
      %v598 = vpack.c.bf16 %v438, %v430
      %v599 = vpack.c.bf16 %v439, %v431
      %v600 = vpack.c.bf16 %v440, %v432
      %v601 = vpack.c.bf16 %v441, %v433
      %v602 = vpack.c.bf16 %v450, %v442
      %v603 = vpack.c.bf16 %v451, %v443
      %v604 = vpack.c.bf16 %v452, %v444
      %v605 = vpack.c.bf16 %v453, %v445
      %v606 = vpack.c.bf16 %v454, %v446
      %v607 = vpack.c.bf16 %v455, %v447
      %v608 = vpack.c.bf16 %v456, %v448
      %v609 = vpack.c.bf16 %v457, %v449
      %v610 = vpack.c.bf16 %v466, %v458
      %v611 = vpack.c.bf16 %v467, %v459
      %v612 = vpack.c.bf16 %v468, %v460
      %v613 = vpack.c.bf16 %v469, %v461
      %v614 = vpack.c.bf16 %v470, %v462
      %v615 = vpack.c.bf16 %v471, %v463
      %v616 = vpack.c.bf16 %v472, %v464
      %v617 = vpack.c.bf16 %v473, %v465
      %v618 = vpack.c.bf16 %v482, %v474
      %v619 = vpack.c.bf16 %v483, %v475
      %v620 = vpack.c.bf16 %v484, %v476
      %v621 = vpack.c.bf16 %v485, %v477
      %v622 = vpack.c.bf16 %v486, %v478
      %v623 = vpack.c.bf16 %v487, %v479
      %v624 = vpack.c.bf16 %v488, %v480
      %v625 = vpack.c.bf16 %v489, %v481
      %v626 = vpack.c.bf16 %v498, %v490
      %v627 = vpack.c.bf16 %v499, %v491
      %v628 = vpack.c.bf16 %v500, %v492
      %v629 = vpack.c.bf16 %v501, %v493
      %v630 = vpack.c.bf16 %v502, %v494
      %v631 = vpack.c.bf16 %v503, %v495
      %v632 = vpack.c.bf16 %v504, %v496
      %v633 = vpack.c.bf16 %v505, %v497
      %v634 = vld [vmem:[%s1] sm:$0xff]
      %v635 = vld [vmem:[%s1 + $0x8] sm:$0xff]
      %v636 = vld [vmem:[%s1 + $0x10] sm:$0xff]
      %v637 = vld [vmem:[%s1 + $0x18] sm:$0xff]
      %v638 = vld [vmem:[%s1 + $0x20] sm:$0xff]
      %v639 = vld [vmem:[%s1 + $0x28] sm:$0xff]
      %v640 = vld [vmem:[%s1 + $0x30] sm:$0xff]
      %v641 = vld [vmem:[%s1 + $0x38] sm:$0xff]
      %v642 = vld [vmem:[%s1 + $0x40] sm:$0xff]
      %v643 = vld [vmem:[%s1 + $0x48] sm:$0xff]
      %v644 = vld [vmem:[%s1 + $0x50] sm:$0xff]
      %v645 = vld [vmem:[%s1 + $0x58] sm:$0xff]
      %v646 = vld [vmem:[%s1 + $0x60] sm:$0xff]
      %v647 = vld [vmem:[%s1 + $0x68] sm:$0xff]
      %v648 = vld [vmem:[%s1 + $0x70] sm:$0xff]
      %v649 = vld [vmem:[%s1 + $0x78] sm:$0xff]
      %v650 = vld [vmem:[%s1 + $0x80] sm:$0xff]
      %v651 = vld [vmem:[%s1 + $0x88] sm:$0xff]
      %v652 = vld [vmem:[%s1 + $0x90] sm:$0xff]
      %v653 = vld [vmem:[%s1 + $0x98] sm:$0xff]
      %v654 = vld [vmem:[%s1 + $0xa0] sm:$0xff]
      %v655 = vld [vmem:[%s1 + $0xa8] sm:$0xff]
      %v656 = vld [vmem:[%s1 + $0xb0] sm:$0xff]
      %v657 = vld [vmem:[%s1 + $0xb8] sm:$0xff]
      %v658 = vld [vmem:[%s1 + $0xc0] sm:$0xff]
      %v659 = vld [vmem:[%s1 + $0xc8] sm:$0xff]
      %v660 = vld [vmem:[%s1 + $0xd0] sm:$0xff]
      %v661 = vld [vmem:[%s1 + $0xd8] sm:$0xff]
      %v662 = vld [vmem:[%s1 + $0xe0] sm:$0xff]
      %v663 = vld [vmem:[%s1 + $0xe8] sm:$0xff]
      %v664 = vld [vmem:[%s1 + $0xf0] sm:$0xff]
      %v665 = vld [vmem:[%s1 + $0xf8] sm:$0xff]
      %v666 = vld [vmem:[%s1 + $0x100] sm:$0xff]
      %v667 = vld [vmem:[%s1 + $0x108] sm:$0xff]
      %v668 = vld [vmem:[%s1 + $0x110] sm:$0xff]
      %v669 = vld [vmem:[%s1 + $0x118] sm:$0xff]
      %v670 = vld [vmem:[%s1 + $0x120] sm:$0xff]
      %v671 = vld [vmem:[%s1 + $0x128] sm:$0xff]
      %v672 = vld [vmem:[%s1 + $0x130] sm:$0xff]
      %v673 = vld [vmem:[%s1 + $0x138] sm:$0xff]
      %v674 = vld [vmem:[%s1 + $0x140] sm:$0xff]
      %v675 = vld [vmem:[%s1 + $0x148] sm:$0xff]
      %v676 = vld [vmem:[%s1 + $0x150] sm:$0xff]
      %v677 = vld [vmem:[%s1 + $0x158] sm:$0xff]
      %v678 = vld [vmem:[%s1 + $0x160] sm:$0xff]
      %v679 = vld [vmem:[%s1 + $0x168] sm:$0xff]
      %v680 = vld [vmem:[%s1 + $0x170] sm:$0xff]
      %v681 = vld [vmem:[%s1 + $0x178] sm:$0xff]
      %v682 = vld [vmem:[%s1 + $0x180] sm:$0xff]
      %v683 = vld [vmem:[%s1 + $0x188] sm:$0xff]
      %v684 = vld [vmem:[%s1 + $0x190] sm:$0xff]
      %v685 = vld [vmem:[%s1 + $0x198] sm:$0xff]
      %v686 = vld [vmem:[%s1 + $0x1a0] sm:$0xff]
      %v687 = vld [vmem:[%s1 + $0x1a8] sm:$0xff]
      %v688 = vld [vmem:[%s1 + $0x1b0] sm:$0xff]
      %v689 = vld [vmem:[%s1 + $0x1b8] sm:$0xff]
      %v690 = vld [vmem:[%s1 + $0x1c0] sm:$0xff]
      %v691 = vld [vmem:[%s1 + $0x1c8] sm:$0xff]
      %v692 = vld [vmem:[%s1 + $0x1d0] sm:$0xff]
      %v693 = vld [vmem:[%s1 + $0x1d8] sm:$0xff]
      %v694 = vld [vmem:[%s1 + $0x1e0] sm:$0xff]
      %v695 = vld [vmem:[%s1 + $0x1e8] sm:$0xff]
      %v696 = vld [vmem:[%s1 + $0x1f0] sm:$0xff]
      %v697 = vld [vmem:[%s1 + $0x1f8] sm:$0xff]
      %v698 = vld [vmem:[%s1 + $0x200] sm:$0xff]
      %v699 = vld [vmem:[%s1 + $0x208] sm:$0xff]
      %v700 = vld [vmem:[%s1 + $0x210] sm:$0xff]
      %v701 = vld [vmem:[%s1 + $0x218] sm:$0xff]
      %v702 = vld [vmem:[%s1 + $0x220] sm:$0xff]
      %v703 = vld [vmem:[%s1 + $0x228] sm:$0xff]
      %v704 = vld [vmem:[%s1 + $0x230] sm:$0xff]
      %v705 = vld [vmem:[%s1 + $0x238] sm:$0xff]
      %v706 = vld [vmem:[%s1 + $0x240] sm:$0xff]
      %v707 = vld [vmem:[%s1 + $0x248] sm:$0xff]
      %v708 = vld [vmem:[%s1 + $0x250] sm:$0xff]
      %v709 = vld [vmem:[%s1 + $0x258] sm:$0xff]
      %v710 = vld [vmem:[%s1 + $0x260] sm:$0xff]
      %v711 = vld [vmem:[%s1 + $0x268] sm:$0xff]
      %v712 = vld [vmem:[%s1 + $0x270] sm:$0xff]
      %v713 = vld [vmem:[%s1 + $0x278] sm:$0xff]
      %v714 = vld [vmem:[%s1 + $0x280] sm:$0xff]
      %v715 = vld [vmem:[%s1 + $0x288] sm:$0xff]
      %v716 = vld [vmem:[%s1 + $0x290] sm:$0xff]
      %v717 = vld [vmem:[%s1 + $0x298] sm:$0xff]
      %v718 = vld [vmem:[%s1 + $0x2a0] sm:$0xff]
      %v719 = vld [vmem:[%s1 + $0x2a8] sm:$0xff]
      %v720 = vld [vmem:[%s1 + $0x2b0] sm:$0xff]
      %v721 = vld [vmem:[%s1 + $0x2b8] sm:$0xff]
      %v722 = vld [vmem:[%s1 + $0x2c0] sm:$0xff]
      %v723 = vld [vmem:[%s1 + $0x2c8] sm:$0xff]
      %v724 = vld [vmem:[%s1 + $0x2d0] sm:$0xff]
      %v725 = vld [vmem:[%s1 + $0x2d8] sm:$0xff]
      %v726 = vld [vmem:[%s1 + $0x2e0] sm:$0xff]
      %v727 = vld [vmem:[%s1 + $0x2e8] sm:$0xff]
      %v728 = vld [vmem:[%s1 + $0x2f0] sm:$0xff]
      %v729 = vld [vmem:[%s1 + $0x2f8] sm:$0xff]
      %v730 = vld [vmem:[%s1 + $0x300] sm:$0xff]
      %v731 = vld [vmem:[%s1 + $0x308] sm:$0xff]
      %v732 = vld [vmem:[%s1 + $0x310] sm:$0xff]
      %v733 = vld [vmem:[%s1 + $0x318] sm:$0xff]
      %v734 = vld [vmem:[%s1 + $0x320] sm:$0xff]
      %v735 = vld [vmem:[%s1 + $0x328] sm:$0xff]
      %v736 = vld [vmem:[%s1 + $0x330] sm:$0xff]
      %v737 = vld [vmem:[%s1 + $0x338] sm:$0xff]
      %v738 = vld [vmem:[%s1 + $0x340] sm:$0xff]
      %v739 = vld [vmem:[%s1 + $0x348] sm:$0xff]
      %v740 = vld [vmem:[%s1 + $0x350] sm:$0xff]
      %v741 = vld [vmem:[%s1 + $0x358] sm:$0xff]
      %v742 = vld [vmem:[%s1 + $0x360] sm:$0xff]
      %v743 = vld [vmem:[%s1 + $0x368] sm:$0xff]
      %v744 = vld [vmem:[%s1 + $0x370] sm:$0xff]
      %v745 = vld [vmem:[%s1 + $0x378] sm:$0xff]
      %v746 = vld [vmem:[%s1 + $0x380] sm:$0xff]
      %v747 = vld [vmem:[%s1 + $0x388] sm:$0xff]
      %v748 = vld [vmem:[%s1 + $0x390] sm:$0xff]
      %v749 = vld [vmem:[%s1 + $0x398] sm:$0xff]
      %v750 = vld [vmem:[%s1 + $0x3a0] sm:$0xff]
      %v751 = vld [vmem:[%s1 + $0x3a8] sm:$0xff]
      %v752 = vld [vmem:[%s1 + $0x3b0] sm:$0xff]
      %v753 = vld [vmem:[%s1 + $0x3b8] sm:$0xff]
      %v754 = vld [vmem:[%s1 + $0x3c0] sm:$0xff]
      %v755 = vld [vmem:[%s1 + $0x3c8] sm:$0xff]
      %v756 = vld [vmem:[%s1 + $0x3d0] sm:$0xff]
      %v757 = vld [vmem:[%s1 + $0x3d8] sm:$0xff]
      %v758 = vld [vmem:[%s1 + $0x3e0] sm:$0xff]
      %v759 = vld [vmem:[%s1 + $0x3e8] sm:$0xff]
      %v760 = vld [vmem:[%s1 + $0x3f0] sm:$0xff]
      %v761 = vld [vmem:[%s1 + $0x3f8] sm:$0xff]
      %v762 = vld [vmem:[%s1 + $0x400] sm:$0xff]
      %v763 = vld [vmem:[%s1 + $0x408] sm:$0xff]
      %v764 = vld [vmem:[%s1 + $0x410] sm:$0xff]
      %v765 = vld [vmem:[%s1 + $0x418] sm:$0xff]
      %v766 = vld [vmem:[%s1 + $0x420] sm:$0xff]
      %v767 = vld [vmem:[%s1 + $0x428] sm:$0xff]
      %v768 = vld [vmem:[%s1 + $0x430] sm:$0xff]
      %v769 = vld [vmem:[%s1 + $0x438] sm:$0xff]
      %v770 = vld [vmem:[%s1 + $0x440] sm:$0xff]
      %v771 = vld [vmem:[%s1 + $0x448] sm:$0xff]
      %v772 = vld [vmem:[%s1 + $0x450] sm:$0xff]
      %v773 = vld [vmem:[%s1 + $0x458] sm:$0xff]
      %v774 = vld [vmem:[%s1 + $0x460] sm:$0xff]
      %v775 = vld [vmem:[%s1 + $0x468] sm:$0xff]
      %v776 = vld [vmem:[%s1 + $0x470] sm:$0xff]
      %v777 = vld [vmem:[%s1 + $0x478] sm:$0xff]
      %v778 = vld [vmem:[%s1 + $0x480] sm:$0xff]
      %v779 = vld [vmem:[%s1 + $0x488] sm:$0xff]
      %v780 = vld [vmem:[%s1 + $0x490] sm:$0xff]
      %v781 = vld [vmem:[%s1 + $0x498] sm:$0xff]
      %v782 = vld [vmem:[%s1 + $0x4a0] sm:$0xff]
      %v783 = vld [vmem:[%s1 + $0x4a8] sm:$0xff]
      %v784 = vld [vmem:[%s1 + $0x4b0] sm:$0xff]
      %v785 = vld [vmem:[%s1 + $0x4b8] sm:$0xff]
      %v786 = vld [vmem:[%s1 + $0x4c0] sm:$0xff]
      %v787 = vld [vmem:[%s1 + $0x4c8] sm:$0xff]
      %v788 = vld [vmem:[%s1 + $0x4d0] sm:$0xff]
      %v789 = vld [vmem:[%s1 + $0x4d8] sm:$0xff]
      %v790 = vld [vmem:[%s1 + $0x4e0] sm:$0xff]
      %v791 = vld [vmem:[%s1 + $0x4e8] sm:$0xff]
      %v792 = vld [vmem:[%s1 + $0x4f0] sm:$0xff]
      %v793 = vld [vmem:[%s1 + $0x4f8] sm:$0xff]
      %v794 = vld [vmem:[%s1 + $0x500] sm:$0xff]
      %v795 = vld [vmem:[%s1 + $0x508] sm:$0xff]
      %v796 = vld [vmem:[%s1 + $0x510] sm:$0xff]
      %v797 = vld [vmem:[%s1 + $0x518] sm:$0xff]
      %v798 = vld [vmem:[%s1 + $0x520] sm:$0xff]
      %v799 = vld [vmem:[%s1 + $0x528] sm:$0xff]
      %v800 = vld [vmem:[%s1 + $0x530] sm:$0xff]
      %v801 = vld [vmem:[%s1 + $0x538] sm:$0xff]
      %v802 = vld [vmem:[%s1 + $0x540] sm:$0xff]
      %v803 = vld [vmem:[%s1 + $0x548] sm:$0xff]
      %v804 = vld [vmem:[%s1 + $0x550] sm:$0xff]
      %v805 = vld [vmem:[%s1 + $0x558] sm:$0xff]
      %v806 = vld [vmem:[%s1 + $0x560] sm:$0xff]
      %v807 = vld [vmem:[%s1 + $0x568] sm:$0xff]
      %v808 = vld [vmem:[%s1 + $0x570] sm:$0xff]
      %v809 = vld [vmem:[%s1 + $0x578] sm:$0xff]
      %v810 = vld [vmem:[%s1 + $0x580] sm:$0xff]
      %v811 = vld [vmem:[%s1 + $0x588] sm:$0xff]
      %v812 = vld [vmem:[%s1 + $0x590] sm:$0xff]
      %v813 = vld [vmem:[%s1 + $0x598] sm:$0xff]
      %v814 = vld [vmem:[%s1 + $0x5a0] sm:$0xff]
      %v815 = vld [vmem:[%s1 + $0x5a8] sm:$0xff]
      %v816 = vld [vmem:[%s1 + $0x5b0] sm:$0xff]
      %v817 = vld [vmem:[%s1 + $0x5b8] sm:$0xff]
      %v818 = vld [vmem:[%s1 + $0x5c0] sm:$0xff]
      %v819 = vld [vmem:[%s1 + $0x5c8] sm:$0xff]
      %v820 = vld [vmem:[%s1 + $0x5d0] sm:$0xff]
      %v821 = vld [vmem:[%s1 + $0x5d8] sm:$0xff]
      %v822 = vld [vmem:[%s1 + $0x5e0] sm:$0xff]
      %v823 = vld [vmem:[%s1 + $0x5e8] sm:$0xff]
      %v824 = vld [vmem:[%s1 + $0x5f0] sm:$0xff]
      %v825 = vld [vmem:[%s1 + $0x5f8] sm:$0xff]
      %v826 = vld [vmem:[%s1 + $0x600] sm:$0xff]
      %v827 = vld [vmem:[%s1 + $0x608] sm:$0xff]
      %v828 = vld [vmem:[%s1 + $0x610] sm:$0xff]
      %v829 = vld [vmem:[%s1 + $0x618] sm:$0xff]
      %v830 = vld [vmem:[%s1 + $0x620] sm:$0xff]
      %v831 = vld [vmem:[%s1 + $0x628] sm:$0xff]
      %v832 = vld [vmem:[%s1 + $0x630] sm:$0xff]
      %v833 = vld [vmem:[%s1 + $0x638] sm:$0xff]
      %v834 = vld [vmem:[%s1 + $0x640] sm:$0xff]
      %v835 = vld [vmem:[%s1 + $0x648] sm:$0xff]
      %v836 = vld [vmem:[%s1 + $0x650] sm:$0xff]
      %v837 = vld [vmem:[%s1 + $0x658] sm:$0xff]
      %v838 = vld [vmem:[%s1 + $0x660] sm:$0xff]
      %v839 = vld [vmem:[%s1 + $0x668] sm:$0xff]
      %v840 = vld [vmem:[%s1 + $0x670] sm:$0xff]
      %v841 = vld [vmem:[%s1 + $0x678] sm:$0xff]
      %v842 = vld [vmem:[%s1 + $0x680] sm:$0xff]
      %v843 = vld [vmem:[%s1 + $0x688] sm:$0xff]
      %v844 = vld [vmem:[%s1 + $0x690] sm:$0xff]
      %v845 = vld [vmem:[%s1 + $0x698] sm:$0xff]
      %v846 = vld [vmem:[%s1 + $0x6a0] sm:$0xff]
      %v847 = vld [vmem:[%s1 + $0x6a8] sm:$0xff]
      %v848 = vld [vmem:[%s1 + $0x6b0] sm:$0xff]
      %v849 = vld [vmem:[%s1 + $0x6b8] sm:$0xff]
      %v850 = vld [vmem:[%s1 + $0x6c0] sm:$0xff]
      %v851 = vld [vmem:[%s1 + $0x6c8] sm:$0xff]
      %v852 = vld [vmem:[%s1 + $0x6d0] sm:$0xff]
      %v853 = vld [vmem:[%s1 + $0x6d8] sm:$0xff]
      %v854 = vld [vmem:[%s1 + $0x6e0] sm:$0xff]
      %v855 = vld [vmem:[%s1 + $0x6e8] sm:$0xff]
      %v856 = vld [vmem:[%s1 + $0x6f0] sm:$0xff]
      %v857 = vld [vmem:[%s1 + $0x6f8] sm:$0xff]
      %v858 = vld [vmem:[%s1 + $0x700] sm:$0xff]
      %v859 = vld [vmem:[%s1 + $0x708] sm:$0xff]
      %v860 = vld [vmem:[%s1 + $0x710] sm:$0xff]
      %v861 = vld [vmem:[%s1 + $0x718] sm:$0xff]
      %v862 = vld [vmem:[%s1 + $0x720] sm:$0xff]
      %v863 = vld [vmem:[%s1 + $0x728] sm:$0xff]
      %v864 = vld [vmem:[%s1 + $0x730] sm:$0xff]
      %v865 = vld [vmem:[%s1 + $0x738] sm:$0xff]
      %v866 = vld [vmem:[%s1 + $0x740] sm:$0xff]
      %v867 = vld [vmem:[%s1 + $0x748] sm:$0xff]
      %v868 = vld [vmem:[%s1 + $0x750] sm:$0xff]
      %v869 = vld [vmem:[%s1 + $0x758] sm:$0xff]
      %v870 = vld [vmem:[%s1 + $0x760] sm:$0xff]
      %v871 = vld [vmem:[%s1 + $0x768] sm:$0xff]
      %v872 = vld [vmem:[%s1 + $0x770] sm:$0xff]
      %v873 = vld [vmem:[%s1 + $0x778] sm:$0xff]
      %v874 = vld [vmem:[%s1 + $0x780] sm:$0xff]
      %v875 = vld [vmem:[%s1 + $0x788] sm:$0xff]
      %v876 = vld [vmem:[%s1 + $0x790] sm:$0xff]
      %v877 = vld [vmem:[%s1 + $0x798] sm:$0xff]
      %v878 = vld [vmem:[%s1 + $0x7a0] sm:$0xff]
      %v879 = vld [vmem:[%s1 + $0x7a8] sm:$0xff]
      %v880 = vld [vmem:[%s1 + $0x7b0] sm:$0xff]
      %v881 = vld [vmem:[%s1 + $0x7b8] sm:$0xff]
      %v882 = vld [vmem:[%s1 + $0x7c0] sm:$0xff]
      %v883 = vld [vmem:[%s1 + $0x7c8] sm:$0xff]
      %v884 = vld [vmem:[%s1 + $0x7d0] sm:$0xff]
      %v885 = vld [vmem:[%s1 + $0x7d8] sm:$0xff]
      %v886 = vld [vmem:[%s1 + $0x7e0] sm:$0xff]
      %v887 = vld [vmem:[%s1 + $0x7e8] sm:$0xff]
      %v888 = vld [vmem:[%s1 + $0x7f0] sm:$0xff]
      %v889 = vld [vmem:[%s1 + $0x7f8] sm:$0xff]
      %v890 = vpack.c.bf16 %v636, %v634
      %v891 = vpack.c.bf16 %v637, %v635
      %v892 = vpack.c.bf16 %v640, %v638
      %v893 = vpack.c.bf16 %v641, %v639
      %v894 = vpack.c.bf16 %v644, %v642
      %v895 = vpack.c.bf16 %v645, %v643
      %v896 = vpack.c.bf16 %v648, %v646
      %v897 = vpack.c.bf16 %v649, %v647
      %v898 = vpack.c.bf16 %v652, %v650
      %v899 = vpack.c.bf16 %v653, %v651
      %v900 = vpack.c.bf16 %v656, %v654
      %v901 = vpack.c.bf16 %v657, %v655
      %v902 = vpack.c.bf16 %v660, %v658
      %v903 = vpack.c.bf16 %v661, %v659
      %v904 = vpack.c.bf16 %v664, %v662
      %v905 = vpack.c.bf16 %v665, %v663
      %v906 = vpack.c.bf16 %v668, %v666
      %v907 = vpack.c.bf16 %v669, %v667
      %v908 = vpack.c.bf16 %v672, %v670
      %v909 = vpack.c.bf16 %v673, %v671
      %v910 = vpack.c.bf16 %v676, %v674
      %v911 = vpack.c.bf16 %v677, %v675
      %v912 = vpack.c.bf16 %v680, %v678
      %v913 = vpack.c.bf16 %v681, %v679
      %v914 = vpack.c.bf16 %v684, %v682
      %v915 = vpack.c.bf16 %v685, %v683
      %v916 = vpack.c.bf16 %v688, %v686
      %v917 = vpack.c.bf16 %v689, %v687
      %v918 = vpack.c.bf16 %v692, %v690
      %v919 = vpack.c.bf16 %v693, %v691
      %v920 = vpack.c.bf16 %v696, %v694
      %v921 = vpack.c.bf16 %v697, %v695
      %v922 = vpack.c.bf16 %v700, %v698
      %v923 = vpack.c.bf16 %v701, %v699
      %v924 = vpack.c.bf16 %v704, %v702
      %v925 = vpack.c.bf16 %v705, %v703
      %v926 = vpack.c.bf16 %v708, %v706
      %v927 = vpack.c.bf16 %v709, %v707
      %v928 = vpack.c.bf16 %v712, %v710
      %v929 = vpack.c.bf16 %v713, %v711
      %v930 = vpack.c.bf16 %v716, %v714
      %v931 = vpack.c.bf16 %v717, %v715
      %v932 = vpack.c.bf16 %v720, %v718
      %v933 = vpack.c.bf16 %v721, %v719
      %v934 = vpack.c.bf16 %v724, %v722
      %v935 = vpack.c.bf16 %v725, %v723
      %v936 = vpack.c.bf16 %v728, %v726
      %v937 = vpack.c.bf16 %v729, %v727
      %v938 = vpack.c.bf16 %v732, %v730
      %v939 = vpack.c.bf16 %v733, %v731
      %v940 = vpack.c.bf16 %v736, %v734
      %v941 = vpack.c.bf16 %v737, %v735
      %v942 = vpack.c.bf16 %v740, %v738
      %v943 = vpack.c.bf16 %v741, %v739
      %v944 = vpack.c.bf16 %v744, %v742
      %v945 = vpack.c.bf16 %v745, %v743
      %v946 = vpack.c.bf16 %v748, %v746
      %v947 = vpack.c.bf16 %v749, %v747
      %v948 = vpack.c.bf16 %v752, %v750
      %v949 = vpack.c.bf16 %v753, %v751
      %v950 = vpack.c.bf16 %v756, %v754
      %v951 = vpack.c.bf16 %v757, %v755
      %v952 = vpack.c.bf16 %v760, %v758
      %v953 = vpack.c.bf16 %v761, %v759
      %v954 = vpack.c.bf16 %v764, %v762
      %v955 = vpack.c.bf16 %v765, %v763
      %v956 = vpack.c.bf16 %v768, %v766
      %v957 = vpack.c.bf16 %v769, %v767
      %v958 = vpack.c.bf16 %v772, %v770
      %v959 = vpack.c.bf16 %v773, %v771
      %v960 = vpack.c.bf16 %v776, %v774
      %v961 = vpack.c.bf16 %v777, %v775
      %v962 = vpack.c.bf16 %v780, %v778
      %v963 = vpack.c.bf16 %v781, %v779
      %v964 = vpack.c.bf16 %v784, %v782
      %v965 = vpack.c.bf16 %v785, %v783
      %v966 = vpack.c.bf16 %v788, %v786
      %v967 = vpack.c.bf16 %v789, %v787
      %v968 = vpack.c.bf16 %v792, %v790
      %v969 = vpack.c.bf16 %v793, %v791
      %v970 = vpack.c.bf16 %v796, %v794
      %v971 = vpack.c.bf16 %v797, %v795
      %v972 = vpack.c.bf16 %v800, %v798
      %v973 = vpack.c.bf16 %v801, %v799
      %v974 = vpack.c.bf16 %v804, %v802
      %v975 = vpack.c.bf16 %v805, %v803
      %v976 = vpack.c.bf16 %v808, %v806
      %v977 = vpack.c.bf16 %v809, %v807
      %v978 = vpack.c.bf16 %v812, %v810
      %v979 = vpack.c.bf16 %v813, %v811
      %v980 = vpack.c.bf16 %v816, %v814
      %v981 = vpack.c.bf16 %v817, %v815
      %v982 = vpack.c.bf16 %v820, %v818
      %v983 = vpack.c.bf16 %v821, %v819
      %v984 = vpack.c.bf16 %v824, %v822
      %v985 = vpack.c.bf16 %v825, %v823
      %v986 = vpack.c.bf16 %v828, %v826
      %v987 = vpack.c.bf16 %v829, %v827
      %v988 = vpack.c.bf16 %v832, %v830
      %v989 = vpack.c.bf16 %v833, %v831
      %v990 = vpack.c.bf16 %v836, %v834
      %v991 = vpack.c.bf16 %v837, %v835
      %v992 = vpack.c.bf16 %v840, %v838
      %v993 = vpack.c.bf16 %v841, %v839
      %v994 = vpack.c.bf16 %v844, %v842
      %v995 = vpack.c.bf16 %v845, %v843
      %v996 = vpack.c.bf16 %v848, %v846
      %v997 = vpack.c.bf16 %v849, %v847
      %v998 = vpack.c.bf16 %v852, %v850
      %v999 = vpack.c.bf16 %v853, %v851
      %v1000 = vpack.c.bf16 %v856, %v854
      %v1001 = vpack.c.bf16 %v857, %v855
      %v1002 = vpack.c.bf16 %v860, %v858
      %v1003 = vpack.c.bf16 %v861, %v859
      %v1004 = vpack.c.bf16 %v864, %v862
      %v1005 = vpack.c.bf16 %v865, %v863
      %v1006 = vpack.c.bf16 %v868, %v866
      %v1007 = vpack.c.bf16 %v869, %v867
      %v1008 = vpack.c.bf16 %v872, %v870
      %v1009 = vpack.c.bf16 %v873, %v871
      %v1010 = vpack.c.bf16 %v876, %v874
      %v1011 = vpack.c.bf16 %v877, %v875
      %v1012 = vpack.c.bf16 %v880, %v878
      %v1013 = vpack.c.bf16 %v881, %v879
      %v1014 = vpack.c.bf16 %v884, %v882
      %v1015 = vpack.c.bf16 %v885, %v883
      %v1016 = vpack.c.bf16 %v888, %v886
      %v1017 = vpack.c.bf16 %v889, %v887
      %1018 = vmatprep.subr.bf16.mxu0 %v905
      %1019 = vmatpush1.bf16.msra.mxu0 %v904
      %1020 = vmatprep.subr.bf16.mxu0 %v903
      %1021 = vmatpush1.bf16.msra.mxu0 %v902
      %1022 = vmatprep.subr.bf16.mxu0 %v901
      %1023 = vmatpush1.bf16.msra.mxu0 %v900
      %1024 = vmatprep.subr.bf16.mxu0 %v899
      %1025 = vmatpush1.bf16.msra.mxu0 %v898
      %1026 = vmatprep.subr.bf16.mxu0 %v897
      %1027 = vmatpush1.bf16.msra.mxu0 %v896
      %1028 = vmatprep.subr.bf16.mxu0 %v895
      %1029 = vmatpush1.bf16.msra.mxu0 %v894
      %1030 = vmatprep.subr.bf16.mxu0 %v893
      %1031 = vmatpush1.bf16.msra.mxu0 %v892
      %1032 = vmatprep.subr.bf16.mxu0 %v891
      %1033 = vmatpush1.bf16.msra.mxu0 %v890
      %1034 = vmatprep.subr.bf16.mxu0 %v921
      %1035 = vmatpush2.bf16.msra.mxu0 %v920
      %1036 = vmatprep.subr.bf16.mxu0 %v919
      %1037 = vmatpush2.bf16.msra.mxu0 %v918
      %1038 = vmatprep.subr.bf16.mxu0 %v917
      %1039 = vmatpush2.bf16.msra.mxu0 %v916
      %1040 = vmatprep.subr.bf16.mxu0 %v915
      %1041 = vmatpush2.bf16.msra.mxu0 %v914
      %1042 = vmatprep.subr.bf16.mxu0 %v913
      %1043 = vmatpush2.bf16.msra.mxu0 %v912
      %1044 = vmatprep.subr.bf16.mxu0 %v911
      %1045 = vmatpush2.bf16.msra.mxu0 %v910
      %1046 = vmatprep.subr.bf16.mxu0 %v909
      %1047 = vmatpush2.bf16.msra.mxu0 %v908
      %1048 = vmatprep.subr.bf16.mxu0 %v907
      %1049 = vmatpush2.bf16.msra.mxu0 %v906
      %1050 = vmatprep.mubr.bf16.mxu0 %v507
      %1051 = vmatmul.mubr.bf16.gmra.mxu0 %v506
      %v1052 = vpop.f32.mrf.mxu0
      %v1053 = vadd.f32 0.0, %v1052
      %v1054 = vpop.f32.mrf.mxu0
      %v1055 = vadd.f32 0.0, %v1054
      %v1056 = vpop.f32.mrf.mxu0
      %v1057 = vadd.f32 0.0, %v1056
      %v1058 = vpop.f32.mrf.mxu0
      %v1059 = vadd.f32 0.0, %v1058
      %1060 = vmatprep.mubr.bf16.mxu0 %v515
      %1061 = vmatmul.mubr.bf16.gmra.mxu0 %v514
      %v1062 = vpop.f32.mrf.mxu0
      %v1063 = vadd.f32 0.0, %v1062
      %v1064 = vpop.f32.mrf.mxu0
      %v1065 = vadd.f32 0.0, %v1064
      %v1066 = vpop.f32.mrf.mxu0
      %v1067 = vadd.f32 0.0, %v1066
      %v1068 = vpop.f32.mrf.mxu0
      %v1069 = vadd.f32 0.0, %v1068
      %1070 = vmatprep.mubr.bf16.mxu0 %v523
      %1071 = vmatmul.mubr.bf16.gmra.mxu0 %v522
      %v1072 = vpop.f32.mrf.mxu0
      %v1073 = vadd.f32 0.0, %v1072
      %v1074 = vpop.f32.mrf.mxu0
      %v1075 = vadd.f32 0.0, %v1074
      %v1076 = vpop.f32.mrf.mxu0
      %v1077 = vadd.f32 0.0, %v1076
      %v1078 = vpop.f32.mrf.mxu0
      %v1079 = vadd.f32 0.0, %v1078
      %1080 = vmatprep.mubr.bf16.mxu0 %v531
      %1081 = vmatmul.mubr.bf16.gmra.mxu0 %v530
      %v1082 = vpop.f32.mrf.mxu0
      %v1083 = vadd.f32 0.0, %v1082
      %v1084 = vpop.f32.mrf.mxu0
      %v1085 = vadd.f32 0.0, %v1084
      %v1086 = vpop.f32.mrf.mxu0
      %v1087 = vadd.f32 0.0, %v1086
      %v1088 = vpop.f32.mrf.mxu0
      %v1089 = vadd.f32 0.0, %v1088
      %1090 = vmatprep.mubr.bf16.mxu0 %v539
      %1091 = vmatmul.mubr.bf16.gmra.mxu0 %v538
      %v1092 = vpop.f32.mrf.mxu0
      %v1093 = vadd.f32 0.0, %v1092
      %v1094 = vpop.f32.mrf.mxu0
      %v1095 = vadd.f32 0.0, %v1094
      %v1096 = vpop.f32.mrf.mxu0
      %v1097 = vadd.f32 0.0, %v1096
      %v1098 = vpop.f32.mrf.mxu0
      %v1099 = vadd.f32 0.0, %v1098
      %1100 = vmatprep.mubr.bf16.mxu0 %v547
      %1101 = vmatmul.mubr.bf16.gmra.mxu0 %v546
      %v1102 = vpop.f32.mrf.mxu0
      %v1103 = vadd.f32 0.0, %v1102
      %v1104 = vpop.f32.mrf.mxu0
      %v1105 = vadd.f32 0.0, %v1104
      %v1106 = vpop.f32.mrf.mxu0
      %v1107 = vadd.f32 0.0, %v1106
      %v1108 = vpop.f32.mrf.mxu0
      %v1109 = vadd.f32 0.0, %v1108
      %1110 = vmatprep.mubr.bf16.mxu0 %v555
      %1111 = vmatmul.mubr.bf16.gmra.mxu0 %v554
      %v1112 = vpop.f32.mrf.mxu0
      %v1113 = vadd.f32 0.0, %v1112
      %v1114 = vpop.f32.mrf.mxu0
      %v1115 = vadd.f32 0.0, %v1114
      %v1116 = vpop.f32.mrf.mxu0
      %v1117 = vadd.f32 0.0, %v1116
      %v1118 = vpop.f32.mrf.mxu0
      %v1119 = vadd.f32 0.0, %v1118
      %1120 = vmatprep.mubr.bf16.mxu0 %v563
      %1121 = vmatmul.mubr.bf16.gmra.mxu0 %v562
      %v1122 = vpop.f32.mrf.mxu0
      %v1123 = vadd.f32 0.0, %v1122
      %v1124 = vpop.f32.mrf.mxu0
      %v1125 = vadd.f32 0.0, %v1124
      %v1126 = vpop.f32.mrf.mxu0
      %v1127 = vadd.f32 0.0, %v1126
      %v1128 = vpop.f32.mrf.mxu0
      %v1129 = vadd.f32 0.0, %v1128
      %1130 = vmatprep.mubr.bf16.mxu0 %v571
      %1131 = vmatmul.mubr.bf16.gmra.mxu0 %v570
      %v1132 = vpop.f32.mrf.mxu0
      %v1133 = vadd.f32 0.0, %v1132
      %v1134 = vpop.f32.mrf.mxu0
      %v1135 = vadd.f32 0.0, %v1134
      %v1136 = vpop.f32.mrf.mxu0
      %v1137 = vadd.f32 0.0, %v1136
      %v1138 = vpop.f32.mrf.mxu0
      %v1139 = vadd.f32 0.0, %v1138
      %1140 = vmatprep.mubr.bf16.mxu0 %v579
      %1141 = vmatmul.mubr.bf16.gmra.mxu0 %v578
      %v1142 = vpop.f32.mrf.mxu0
      %v1143 = vadd.f32 0.0, %v1142
      %v1144 = vpop.f32.mrf.mxu0
      %v1145 = vadd.f32 0.0, %v1144
      %v1146 = vpop.f32.mrf.mxu0
      %v1147 = vadd.f32 0.0, %v1146
      %v1148 = vpop.f32.mrf.mxu0
      %v1149 = vadd.f32 0.0, %v1148
      %1150 = vmatprep.mubr.bf16.mxu0 %v587
      %1151 = vmatmul.mubr.bf16.gmra.mxu0 %v586
      %v1152 = vpop.f32.mrf.mxu0
      %v1153 = vadd.f32 0.0, %v1152
      %v1154 = vpop.f32.mrf.mxu0
      %v1155 = vadd.f32 0.0, %v1154
      %v1156 = vpop.f32.mrf.mxu0
      %v1157 = vadd.f32 0.0, %v1156
      %v1158 = vpop.f32.mrf.mxu0
      %v1159 = vadd.f32 0.0, %v1158
      %1160 = vmatprep.mubr.bf16.mxu0 %v595
      %1161 = vmatmul.mubr.bf16.gmra.mxu0 %v594
      %v1162 = vpop.f32.mrf.mxu0
      %v1163 = vadd.f32 0.0, %v1162
      %v1164 = vpop.f32.mrf.mxu0
      %v1165 = vadd.f32 0.0, %v1164
      %v1166 = vpop.f32.mrf.mxu0
      %v1167 = vadd.f32 0.0, %v1166
      %v1168 = vpop.f32.mrf.mxu0
      %v1169 = vadd.f32 0.0, %v1168
      %1170 = vmatprep.mubr.bf16.mxu0 %v603
      %1171 = vmatmul.mubr.bf16.gmra.mxu0 %v602
      %v1172 = vpop.f32.mrf.mxu0
      %v1173 = vadd.f32 0.0, %v1172
      %v1174 = vpop.f32.mrf.mxu0
      %v1175 = vadd.f32 0.0, %v1174
      %v1176 = vpop.f32.mrf.mxu0
      %v1177 = vadd.f32 0.0, %v1176
      %v1178 = vpop.f32.mrf.mxu0
      %v1179 = vadd.f32 0.0, %v1178
      %1180 = vmatprep.mubr.bf16.mxu0 %v611
      %1181 = vmatmul.mubr.bf16.gmra.mxu0 %v610
      %v1182 = vpop.f32.mrf.mxu0
      %v1183 = vadd.f32 0.0, %v1182
      %v1184 = vpop.f32.mrf.mxu0
      %v1185 = vadd.f32 0.0, %v1184
      %v1186 = vpop.f32.mrf.mxu0
      %v1187 = vadd.f32 0.0, %v1186
      %v1188 = vpop.f32.mrf.mxu0
      %v1189 = vadd.f32 0.0, %v1188
      %1190 = vmatprep.mubr.bf16.mxu0 %v619
      %1191 = vmatmul.mubr.bf16.gmra.mxu0 %v618
      %v1192 = vpop.f32.mrf.mxu0
      %v1193 = vadd.f32 0.0, %v1192
      %v1194 = vpop.f32.mrf.mxu0
      %v1195 = vadd.f32 0.0, %v1194
      %v1196 = vpop.f32.mrf.mxu0
      %v1197 = vadd.f32 0.0, %v1196
      %v1198 = vpop.f32.mrf.mxu0
      %v1199 = vadd.f32 0.0, %v1198
      %1200 = vmatprep.mubr.bf16.mxu0 %v627
      %1201 = vmatmul.mubr.bf16.gmra.mxu0 %v626
      %v1202 = vpop.f32.mrf.mxu0
      %v1203 = vadd.f32 0.0, %v1202
      %v1204 = vpop.f32.mrf.mxu0
      %v1205 = vadd.f32 0.0, %v1204
      %v1206 = vpop.f32.mrf.mxu0
      %v1207 = vadd.f32 0.0, %v1206
      %v1208 = vpop.f32.mrf.mxu0
      %v1209 = vadd.f32 0.0, %v1208
      %1210 = vdwg.mxu0
      %1211 = vmatprep.subr.bf16.mxu0 %v937
      %1212 = vmatpush1.bf16.msra.mxu0 %v936
      %1213 = vmatprep.subr.bf16.mxu0 %v935
      %1214 = vmatpush1.bf16.msra.mxu0 %v934
      %1215 = vmatprep.subr.bf16.mxu0 %v933
      %1216 = vmatpush1.bf16.msra.mxu0 %v932
      %1217 = vmatprep.subr.bf16.mxu0 %v931
      %1218 = vmatpush1.bf16.msra.mxu0 %v930
      %1219 = vmatprep.subr.bf16.mxu0 %v929
      %1220 = vmatpush1.bf16.msra.mxu0 %v928
      %1221 = vmatprep.subr.bf16.mxu0 %v927
      %1222 = vmatpush1.bf16.msra.mxu0 %v926
      %1223 = vmatprep.subr.bf16.mxu0 %v925
      %1224 = vmatpush1.bf16.msra.mxu0 %v924
      %1225 = vmatprep.subr.bf16.mxu0 %v923
      %1226 = vmatpush1.bf16.msra.mxu0 %v922
      %1227 = vmatprep.subr.bf16.mxu0 %v953
      %1228 = vmatpush2.bf16.msra.mxu0 %v952
      %1229 = vmatprep.subr.bf16.mxu0 %v951
      %1230 = vmatpush2.bf16.msra.mxu0 %v950
      %1231 = vmatprep.subr.bf16.mxu0 %v949
      %1232 = vmatpush2.bf16.msra.mxu0 %v948
      %1233 = vmatprep.subr.bf16.mxu0 %v947
      %1234 = vmatpush2.bf16.msra.mxu0 %v946
      %1235 = vmatprep.subr.bf16.mxu0 %v945
      %1236 = vmatpush2.bf16.msra.mxu0 %v944
      %1237 = vmatprep.subr.bf16.mxu0 %v943
      %1238 = vmatpush2.bf16.msra.mxu0 %v942
      %1239 = vmatprep.subr.bf16.mxu0 %v941
      %1240 = vmatpush2.bf16.msra.mxu0 %v940
      %1241 = vmatprep.subr.bf16.mxu0 %v939
      %1242 = vmatpush2.bf16.msra.mxu0 %v938
      %1243 = vmatprep.mubr.bf16.mxu0 %v509
      %1244 = vmatmul.mubr.bf16.gmra.mxu0 %v508
      %v1245 = vpop.f32.mrf.mxu0
      %v1246 = vadd.f32 %v1053, %v1245
      %v1247 = vpop.f32.mrf.mxu0
      %v1248 = vadd.f32 %v1055, %v1247
      %v1249 = vpop.f32.mrf.mxu0
      %v1250 = vadd.f32 %v1057, %v1249
      %v1251 = vpop.f32.mrf.mxu0
      %v1252 = vadd.f32 %v1059, %v1251
      %1253 = vmatprep.mubr.bf16.mxu0 %v517
      %1254 = vmatmul.mubr.bf16.gmra.mxu0 %v516
      %v1255 = vpop.f32.mrf.mxu0
      %v1256 = vadd.f32 %v1063, %v1255
      %v1257 = vpop.f32.mrf.mxu0
      %v1258 = vadd.f32 %v1065, %v1257
      %v1259 = vpop.f32.mrf.mxu0
      %v1260 = vadd.f32 %v1067, %v1259
      %v1261 = vpop.f32.mrf.mxu0
      %v1262 = vadd.f32 %v1069, %v1261
      %1263 = vmatprep.mubr.bf16.mxu0 %v525
      %1264 = vmatmul.mubr.bf16.gmra.mxu0 %v524
      %v1265 = vpop.f32.mrf.mxu0
      %v1266 = vadd.f32 %v1073, %v1265
      %v1267 = vpop.f32.mrf.mxu0
      %v1268 = vadd.f32 %v1075, %v1267
      %v1269 = vpop.f32.mrf.mxu0
      %v1270 = vadd.f32 %v1077, %v1269
      %v1271 = vpop.f32.mrf.mxu0
      %v1272 = vadd.f32 %v1079, %v1271
      %1273 = vmatprep.mubr.bf16.mxu0 %v533
      %1274 = vmatmul.mubr.bf16.gmra.mxu0 %v532
      %v1275 = vpop.f32.mrf.mxu0
      %v1276 = vadd.f32 %v1083, %v1275
      %v1277 = vpop.f32.mrf.mxu0
      %v1278 = vadd.f32 %v1085, %v1277
      %v1279 = vpop.f32.mrf.mxu0
      %v1280 = vadd.f32 %v1087, %v1279
      %v1281 = vpop.f32.mrf.mxu0
      %v1282 = vadd.f32 %v1089, %v1281
      %1283 = vmatprep.mubr.bf16.mxu0 %v541
      %1284 = vmatmul.mubr.bf16.gmra.mxu0 %v540
      %v1285 = vpop.f32.mrf.mxu0
      %v1286 = vadd.f32 %v1093, %v1285
      %v1287 = vpop.f32.mrf.mxu0
      %v1288 = vadd.f32 %v1095, %v1287
      %v1289 = vpop.f32.mrf.mxu0
      %v1290 = vadd.f32 %v1097, %v1289
      %v1291 = vpop.f32.mrf.mxu0
      %v1292 = vadd.f32 %v1099, %v1291
      %1293 = vmatprep.mubr.bf16.mxu0 %v549
      %1294 = vmatmul.mubr.bf16.gmra.mxu0 %v548
      %v1295 = vpop.f32.mrf.mxu0
      %v1296 = vadd.f32 %v1103, %v1295
      %v1297 = vpop.f32.mrf.mxu0
      %v1298 = vadd.f32 %v1105, %v1297
      %v1299 = vpop.f32.mrf.mxu0
      %v1300 = vadd.f32 %v1107, %v1299
      %v1301 = vpop.f32.mrf.mxu0
      %v1302 = vadd.f32 %v1109, %v1301
      %1303 = vmatprep.mubr.bf16.mxu0 %v557
      %1304 = vmatmul.mubr.bf16.gmra.mxu0 %v556
      %v1305 = vpop.f32.mrf.mxu0
      %v1306 = vadd.f32 %v1113, %v1305
      %v1307 = vpop.f32.mrf.mxu0
      %v1308 = vadd.f32 %v1115, %v1307
      %v1309 = vpop.f32.mrf.mxu0
      %v1310 = vadd.f32 %v1117, %v1309
      %v1311 = vpop.f32.mrf.mxu0
      %v1312 = vadd.f32 %v1119, %v1311
      %1313 = vmatprep.mubr.bf16.mxu0 %v565
      %1314 = vmatmul.mubr.bf16.gmra.mxu0 %v564
      %v1315 = vpop.f32.mrf.mxu0
      %v1316 = vadd.f32 %v1123, %v1315
      %v1317 = vpop.f32.mrf.mxu0
      %v1318 = vadd.f32 %v1125, %v1317
      %v1319 = vpop.f32.mrf.mxu0
      %v1320 = vadd.f32 %v1127, %v1319
      %v1321 = vpop.f32.mrf.mxu0
      %v1322 = vadd.f32 %v1129, %v1321
      %1323 = vmatprep.mubr.bf16.mxu0 %v573
      %1324 = vmatmul.mubr.bf16.gmra.mxu0 %v572
      %v1325 = vpop.f32.mrf.mxu0
      %v1326 = vadd.f32 %v1133, %v1325
      %v1327 = vpop.f32.mrf.mxu0
      %v1328 = vadd.f32 %v1135, %v1327
      %v1329 = vpop.f32.mrf.mxu0
      %v1330 = vadd.f32 %v1137, %v1329
      %v1331 = vpop.f32.mrf.mxu0
      %v1332 = vadd.f32 %v1139, %v1331
      %1333 = vmatprep.mubr.bf16.mxu0 %v581
      %1334 = vmatmul.mubr.bf16.gmra.mxu0 %v580
      %v1335 = vpop.f32.mrf.mxu0
      %v1336 = vadd.f32 %v1143, %v1335
      %v1337 = vpop.f32.mrf.mxu0
      %v1338 = vadd.f32 %v1145, %v1337
      %v1339 = vpop.f32.mrf.mxu0
      %v1340 = vadd.f32 %v1147, %v1339
      %v1341 = vpop.f32.mrf.mxu0
      %v1342 = vadd.f32 %v1149, %v1341
      %1343 = vmatprep.mubr.bf16.mxu0 %v589
      %1344 = vmatmul.mubr.bf16.gmra.mxu0 %v588
      %v1345 = vpop.f32.mrf.mxu0
      %v1346 = vadd.f32 %v1153, %v1345
      %v1347 = vpop.f32.mrf.mxu0
      %v1348 = vadd.f32 %v1155, %v1347
      %v1349 = vpop.f32.mrf.mxu0
      %v1350 = vadd.f32 %v1157, %v1349
      %v1351 = vpop.f32.mrf.mxu0
      %v1352 = vadd.f32 %v1159, %v1351
      %1353 = vmatprep.mubr.bf16.mxu0 %v597
      %1354 = vmatmul.mubr.bf16.gmra.mxu0 %v596
      %v1355 = vpop.f32.mrf.mxu0
      %v1356 = vadd.f32 %v1163, %v1355
      %v1357 = vpop.f32.mrf.mxu0
      %v1358 = vadd.f32 %v1165, %v1357
      %v1359 = vpop.f32.mrf.mxu0
      %v1360 = vadd.f32 %v1167, %v1359
      %v1361 = vpop.f32.mrf.mxu0
      %v1362 = vadd.f32 %v1169, %v1361
      %1363 = vmatprep.mubr.bf16.mxu0 %v605
      %1364 = vmatmul.mubr.bf16.gmra.mxu0 %v604
      %v1365 = vpop.f32.mrf.mxu0
      %v1366 = vadd.f32 %v1173, %v1365
      %v1367 = vpop.f32.mrf.mxu0
      %v1368 = vadd.f32 %v1175, %v1367
      %v1369 = vpop.f32.mrf.mxu0
      %v1370 = vadd.f32 %v1177, %v1369
      %v1371 = vpop.f32.mrf.mxu0
      %v1372 = vadd.f32 %v1179, %v1371
      %1373 = vmatprep.mubr.bf16.mxu0 %v613
      %1374 = vmatmul.mubr.bf16.gmra.mxu0 %v612
      %v1375 = vpop.f32.mrf.mxu0
      %v1376 = vadd.f32 %v1183, %v1375
      %v1377 = vpop.f32.mrf.mxu0
      %v1378 = vadd.f32 %v1185, %v1377
      %v1379 = vpop.f32.mrf.mxu0
      %v1380 = vadd.f32 %v1187, %v1379
      %v1381 = vpop.f32.mrf.mxu0
      %v1382 = vadd.f32 %v1189, %v1381
      %1383 = vmatprep.mubr.bf16.mxu0 %v621
      %1384 = vmatmul.mubr.bf16.gmra.mxu0 %v620
      %v1385 = vpop.f32.mrf.mxu0
      %v1386 = vadd.f32 %v1193, %v1385
      %v1387 = vpop.f32.mrf.mxu0
      %v1388 = vadd.f32 %v1195, %v1387
      %v1389 = vpop.f32.mrf.mxu0
      %v1390 = vadd.f32 %v1197, %v1389
      %v1391 = vpop.f32.mrf.mxu0
      %v1392 = vadd.f32 %v1199, %v1391
      %1393 = vmatprep.mubr.bf16.mxu0 %v629
      %1394 = vmatmul.mubr.bf16.gmra.mxu0 %v628
      %v1395 = vpop.f32.mrf.mxu0
      %v1396 = vadd.f32 %v1203, %v1395
      %v1397 = vpop.f32.mrf.mxu0
      %v1398 = vadd.f32 %v1205, %v1397
      %v1399 = vpop.f32.mrf.mxu0
      %v1400 = vadd.f32 %v1207, %v1399
      %v1401 = vpop.f32.mrf.mxu0
      %v1402 = vadd.f32 %v1209, %v1401
      %1403 = vdwg.mxu0
      %1404 = vmatprep.subr.bf16.mxu0 %v969
      %1405 = vmatpush1.bf16.msra.mxu0 %v968
      %1406 = vmatprep.subr.bf16.mxu0 %v967
      %1407 = vmatpush1.bf16.msra.mxu0 %v966
      %1408 = vmatprep.subr.bf16.mxu0 %v965
      %1409 = vmatpush1.bf16.msra.mxu0 %v964
      %1410 = vmatprep.subr.bf16.mxu0 %v963
      %1411 = vmatpush1.bf16.msra.mxu0 %v962
      %1412 = vmatprep.subr.bf16.mxu0 %v961
      %1413 = vmatpush1.bf16.msra.mxu0 %v960
      %1414 = vmatprep.subr.bf16.mxu0 %v959
      %1415 = vmatpush1.bf16.msra.mxu0 %v958
      %1416 = vmatprep.subr.bf16.mxu0 %v957
      %1417 = vmatpush1.bf16.msra.mxu0 %v956
      %1418 = vmatprep.subr.bf16.mxu0 %v955
      %1419 = vmatpush1.bf16.msra.mxu0 %v954
      %1420 = vmatprep.subr.bf16.mxu0 %v985
      %1421 = vmatpush2.bf16.msra.mxu0 %v984
      %1422 = vmatprep.subr.bf16.mxu0 %v983
      %1423 = vmatpush2.bf16.msra.mxu0 %v982
      %1424 = vmatprep.subr.bf16.mxu0 %v981
      %1425 = vmatpush2.bf16.msra.mxu0 %v980
      %1426 = vmatprep.subr.bf16.mxu0 %v979
      %1427 = vmatpush2.bf16.msra.mxu0 %v978
      %1428 = vmatprep.subr.bf16.mxu0 %v977
      %1429 = vmatpush2.bf16.msra.mxu0 %v976
      %1430 = vmatprep.subr.bf16.mxu0 %v975
      %1431 = vmatpush2.bf16.msra.mxu0 %v974
      %1432 = vmatprep.subr.bf16.mxu0 %v973
      %1433 = vmatpush2.bf16.msra.mxu0 %v972
      %1434 = vmatprep.subr.bf16.mxu0 %v971
      %1435 = vmatpush2.bf16.msra.mxu0 %v970
      %1436 = vmatprep.mubr.bf16.mxu0 %v511
      %1437 = vmatmul.mubr.bf16.gmra.mxu0 %v510
      %v1438 = vpop.f32.mrf.mxu0
      %v1439 = vadd.f32 %v1246, %v1438
      %v1440 = vpop.f32.mrf.mxu0
      %v1441 = vadd.f32 %v1248, %v1440
      %v1442 = vpop.f32.mrf.mxu0
      %v1443 = vadd.f32 %v1250, %v1442
      %v1444 = vpop.f32.mrf.mxu0
      %v1445 = vadd.f32 %v1252, %v1444
      %1446 = vmatprep.mubr.bf16.mxu0 %v519
      %1447 = vmatmul.mubr.bf16.gmra.mxu0 %v518
      %v1448 = vpop.f32.mrf.mxu0
      %v1449 = vadd.f32 %v1256, %v1448
      %v1450 = vpop.f32.mrf.mxu0
      %v1451 = vadd.f32 %v1258, %v1450
      %v1452 = vpop.f32.mrf.mxu0
      %v1453 = vadd.f32 %v1260, %v1452
      %v1454 = vpop.f32.mrf.mxu0
      %v1455 = vadd.f32 %v1262, %v1454
      %1456 = vmatprep.mubr.bf16.mxu0 %v527
      %1457 = vmatmul.mubr.bf16.gmra.mxu0 %v526
      %v1458 = vpop.f32.mrf.mxu0
      %v1459 = vadd.f32 %v1266, %v1458
      %v1460 = vpop.f32.mrf.mxu0
      %v1461 = vadd.f32 %v1268, %v1460
      %v1462 = vpop.f32.mrf.mxu0
      %v1463 = vadd.f32 %v1270, %v1462
      %v1464 = vpop.f32.mrf.mxu0
      %v1465 = vadd.f32 %v1272, %v1464
      %1466 = vmatprep.mubr.bf16.mxu0 %v535
      %1467 = vmatmul.mubr.bf16.gmra.mxu0 %v534
      %v1468 = vpop.f32.mrf.mxu0
      %v1469 = vadd.f32 %v1276, %v1468
      %v1470 = vpop.f32.mrf.mxu0
      %v1471 = vadd.f32 %v1278, %v1470
      %v1472 = vpop.f32.mrf.mxu0
      %v1473 = vadd.f32 %v1280, %v1472
      %v1474 = vpop.f32.mrf.mxu0
      %v1475 = vadd.f32 %v1282, %v1474
      %1476 = vmatprep.mubr.bf16.mxu0 %v543
      %1477 = vmatmul.mubr.bf16.gmra.mxu0 %v542
      %v1478 = vpop.f32.mrf.mxu0
      %v1479 = vadd.f32 %v1286, %v1478
      %v1480 = vpop.f32.mrf.mxu0
      %v1481 = vadd.f32 %v1288, %v1480
      %v1482 = vpop.f32.mrf.mxu0
      %v1483 = vadd.f32 %v1290, %v1482
      %v1484 = vpop.f32.mrf.mxu0
      %v1485 = vadd.f32 %v1292, %v1484
      %1486 = vmatprep.mubr.bf16.mxu0 %v551
      %1487 = vmatmul.mubr.bf16.gmra.mxu0 %v550
      %v1488 = vpop.f32.mrf.mxu0
      %v1489 = vadd.f32 %v1296, %v1488
      %v1490 = vpop.f32.mrf.mxu0
      %v1491 = vadd.f32 %v1298, %v1490
      %v1492 = vpop.f32.mrf.mxu0
      %v1493 = vadd.f32 %v1300, %v1492
      %v1494 = vpop.f32.mrf.mxu0
      %v1495 = vadd.f32 %v1302, %v1494
      %1496 = vmatprep.mubr.bf16.mxu0 %v559
      %1497 = vmatmul.mubr.bf16.gmra.mxu0 %v558
      %v1498 = vpop.f32.mrf.mxu0
      %v1499 = vadd.f32 %v1306, %v1498
      %v1500 = vpop.f32.mrf.mxu0
      %v1501 = vadd.f32 %v1308, %v1500
      %v1502 = vpop.f32.mrf.mxu0
      %v1503 = vadd.f32 %v1310, %v1502
      %v1504 = vpop.f32.mrf.mxu0
      %v1505 = vadd.f32 %v1312, %v1504
      %1506 = vmatprep.mubr.bf16.mxu0 %v567
      %1507 = vmatmul.mubr.bf16.gmra.mxu0 %v566
      %v1508 = vpop.f32.mrf.mxu0
      %v1509 = vadd.f32 %v1316, %v1508
      %v1510 = vpop.f32.mrf.mxu0
      %v1511 = vadd.f32 %v1318, %v1510
      %v1512 = vpop.f32.mrf.mxu0
      %v1513 = vadd.f32 %v1320, %v1512
      %v1514 = vpop.f32.mrf.mxu0
      %v1515 = vadd.f32 %v1322, %v1514
      %1516 = vmatprep.mubr.bf16.mxu0 %v575
      %1517 = vmatmul.mubr.bf16.gmra.mxu0 %v574
      %v1518 = vpop.f32.mrf.mxu0
      %v1519 = vadd.f32 %v1326, %v1518
      %v1520 = vpop.f32.mrf.mxu0
      %v1521 = vadd.f32 %v1328, %v1520
      %v1522 = vpop.f32.mrf.mxu0
      %v1523 = vadd.f32 %v1330, %v1522
      %v1524 = vpop.f32.mrf.mxu0
      %v1525 = vadd.f32 %v1332, %v1524
      %1526 = vmatprep.mubr.bf16.mxu0 %v583
      %1527 = vmatmul.mubr.bf16.gmra.mxu0 %v582
      %v1528 = vpop.f32.mrf.mxu0
      %v1529 = vadd.f32 %v1336, %v1528
      %v1530 = vpop.f32.mrf.mxu0
      %v1531 = vadd.f32 %v1338, %v1530
      %v1532 = vpop.f32.mrf.mxu0
      %v1533 = vadd.f32 %v1340, %v1532
      %v1534 = vpop.f32.mrf.mxu0
      %v1535 = vadd.f32 %v1342, %v1534
      %1536 = vmatprep.mubr.bf16.mxu0 %v591
      %1537 = vmatmul.mubr.bf16.gmra.mxu0 %v590
      %v1538 = vpop.f32.mrf.mxu0
      %v1539 = vadd.f32 %v1346, %v1538
      %v1540 = vpop.f32.mrf.mxu0
      %v1541 = vadd.f32 %v1348, %v1540
      %v1542 = vpop.f32.mrf.mxu0
      %v1543 = vadd.f32 %v1350, %v1542
      %v1544 = vpop.f32.mrf.mxu0
      %v1545 = vadd.f32 %v1352, %v1544
      %1546 = vmatprep.mubr.bf16.mxu0 %v599
      %1547 = vmatmul.mubr.bf16.gmra.mxu0 %v598
      %v1548 = vpop.f32.mrf.mxu0
      %v1549 = vadd.f32 %v1356, %v1548
      %v1550 = vpop.f32.mrf.mxu0
      %v1551 = vadd.f32 %v1358, %v1550
      %v1552 = vpop.f32.mrf.mxu0
      %v1553 = vadd.f32 %v1360, %v1552
      %v1554 = vpop.f32.mrf.mxu0
      %v1555 = vadd.f32 %v1362, %v1554
      %1556 = vmatprep.mubr.bf16.mxu0 %v607
      %1557 = vmatmul.mubr.bf16.gmra.mxu0 %v606
      %v1558 = vpop.f32.mrf.mxu0
      %v1559 = vadd.f32 %v1366, %v1558
      %v1560 = vpop.f32.mrf.mxu0
      %v1561 = vadd.f32 %v1368, %v1560
      %v1562 = vpop.f32.mrf.mxu0
      %v1563 = vadd.f32 %v1370, %v1562
      %v1564 = vpop.f32.mrf.mxu0
      %v1565 = vadd.f32 %v1372, %v1564
      %1566 = vmatprep.mubr.bf16.mxu0 %v615
      %1567 = vmatmul.mubr.bf16.gmra.mxu0 %v614
      %v1568 = vpop.f32.mrf.mxu0
      %v1569 = vadd.f32 %v1376, %v1568
      %v1570 = vpop.f32.mrf.mxu0
      %v1571 = vadd.f32 %v1378, %v1570
      %v1572 = vpop.f32.mrf.mxu0
      %v1573 = vadd.f32 %v1380, %v1572
      %v1574 = vpop.f32.mrf.mxu0
      %v1575 = vadd.f32 %v1382, %v1574
      %1576 = vmatprep.mubr.bf16.mxu0 %v623
      %1577 = vmatmul.mubr.bf16.gmra.mxu0 %v622
      %v1578 = vpop.f32.mrf.mxu0
      %v1579 = vadd.f32 %v1386, %v1578
      %v1580 = vpop.f32.mrf.mxu0
      %v1581 = vadd.f32 %v1388, %v1580
      %v1582 = vpop.f32.mrf.mxu0
      %v1583 = vadd.f32 %v1390, %v1582
      %v1584 = vpop.f32.mrf.mxu0
      %v1585 = vadd.f32 %v1392, %v1584
      %1586 = vmatprep.mubr.bf16.mxu0 %v631
      %1587 = vmatmul.mubr.bf16.gmra.mxu0 %v630
      %v1588 = vpop.f32.mrf.mxu0
      %v1589 = vadd.f32 %v1396, %v1588
      %v1590 = vpop.f32.mrf.mxu0
      %v1591 = vadd.f32 %v1398, %v1590
      %v1592 = vpop.f32.mrf.mxu0
      %v1593 = vadd.f32 %v1400, %v1592
      %v1594 = vpop.f32.mrf.mxu0
      %v1595 = vadd.f32 %v1402, %v1594
      %1596 = vdwg.mxu0
      %1597 = vmatprep.subr.bf16.mxu0 %v1001
      %1598 = vmatpush1.bf16.msra.mxu0 %v1000
      %1599 = vmatprep.subr.bf16.mxu0 %v999
      %1600 = vmatpush1.bf16.msra.mxu0 %v998
      %1601 = vmatprep.subr.bf16.mxu0 %v997
      %1602 = vmatpush1.bf16.msra.mxu0 %v996
      %1603 = vmatprep.subr.bf16.mxu0 %v995
      %1604 = vmatpush1.bf16.msra.mxu0 %v994
      %1605 = vmatprep.subr.bf16.mxu0 %v993
      %1606 = vmatpush1.bf16.msra.mxu0 %v992
      %1607 = vmatprep.subr.bf16.mxu0 %v991
      %1608 = vmatpush1.bf16.msra.mxu0 %v990
      %1609 = vmatprep.subr.bf16.mxu0 %v989
      %1610 = vmatpush1.bf16.msra.mxu0 %v988
      %1611 = vmatprep.subr.bf16.mxu0 %v987
      %1612 = vmatpush1.bf16.msra.mxu0 %v986
      %1613 = vmatprep.subr.bf16.mxu0 %v1017
      %1614 = vmatpush2.bf16.msra.mxu0 %v1016
      %1615 = vmatprep.subr.bf16.mxu0 %v1015
      %1616 = vmatpush2.bf16.msra.mxu0 %v1014
      %1617 = vmatprep.subr.bf16.mxu0 %v1013
      %1618 = vmatpush2.bf16.msra.mxu0 %v1012
      %1619 = vmatprep.subr.bf16.mxu0 %v1011
      %1620 = vmatpush2.bf16.msra.mxu0 %v1010
      %1621 = vmatprep.subr.bf16.mxu0 %v1009
      %1622 = vmatpush2.bf16.msra.mxu0 %v1008
      %1623 = vmatprep.subr.bf16.mxu0 %v1007
      %1624 = vmatpush2.bf16.msra.mxu0 %v1006
      %1625 = vmatprep.subr.bf16.mxu0 %v1005
      %1626 = vmatpush2.bf16.msra.mxu0 %v1004
      %1627 = vmatprep.subr.bf16.mxu0 %v1003
      %1628 = vmatpush2.bf16.msra.mxu0 %v1002
      %1629 = vmatprep.mubr.bf16.mxu0 %v513
      %1630 = vmatmul.mubr.bf16.gmra.mxu0 %v512
      %v1631 = vpop.f32.mrf.mxu0
      %v1632 = vadd.f32 %v1439, %v1631
      %v1633 = vpop.f32.mrf.mxu0
      %v1634 = vadd.f32 %v1441, %v1633
      %v1635 = vpop.f32.mrf.mxu0
      %v1636 = vadd.f32 %v1443, %v1635
      %v1637 = vpop.f32.mrf.mxu0
      %v1638 = vadd.f32 %v1445, %v1637
      %1639 = vmatprep.mubr.bf16.mxu0 %v521
      %1640 = vmatmul.mubr.bf16.gmra.mxu0 %v520
      %v1641 = vpop.f32.mrf.mxu0
      %v1642 = vadd.f32 %v1449, %v1641
      %v1643 = vpop.f32.mrf.mxu0
      %v1644 = vadd.f32 %v1451, %v1643
      %v1645 = vpop.f32.mrf.mxu0
      %v1646 = vadd.f32 %v1453, %v1645
      %v1647 = vpop.f32.mrf.mxu0
      %v1648 = vadd.f32 %v1455, %v1647
      %1649 = vmatprep.mubr.bf16.mxu0 %v529
      %1650 = vmatmul.mubr.bf16.gmra.mxu0 %v528
      %v1651 = vpop.f32.mrf.mxu0
      %v1652 = vadd.f32 %v1459, %v1651
      %v1653 = vpop.f32.mrf.mxu0
      %v1654 = vadd.f32 %v1461, %v1653
      %v1655 = vpop.f32.mrf.mxu0
      %v1656 = vadd.f32 %v1463, %v1655
      %v1657 = vpop.f32.mrf.mxu0
      %v1658 = vadd.f32 %v1465, %v1657
      %1659 = vmatprep.mubr.bf16.mxu0 %v537
      %1660 = vmatmul.mubr.bf16.gmra.mxu0 %v536
      %v1661 = vpop.f32.mrf.mxu0
      %v1662 = vadd.f32 %v1469, %v1661
      %v1663 = vpop.f32.mrf.mxu0
      %v1664 = vadd.f32 %v1471, %v1663
      %v1665 = vpop.f32.mrf.mxu0
      %v1666 = vadd.f32 %v1473, %v1665
      %v1667 = vpop.f32.mrf.mxu0
      %v1668 = vadd.f32 %v1475, %v1667
      %1669 = vmatprep.mubr.bf16.mxu0 %v545
      %1670 = vmatmul.mubr.bf16.gmra.mxu0 %v544
      %v1671 = vpop.f32.mrf.mxu0
      %v1672 = vadd.f32 %v1479, %v1671
      %v1673 = vpop.f32.mrf.mxu0
      %v1674 = vadd.f32 %v1481, %v1673
      %v1675 = vpop.f32.mrf.mxu0
      %v1676 = vadd.f32 %v1483, %v1675
      %v1677 = vpop.f32.mrf.mxu0
      %v1678 = vadd.f32 %v1485, %v1677
      %1679 = vmatprep.mubr.bf16.mxu0 %v553
      %1680 = vmatmul.mubr.bf16.gmra.mxu0 %v552
      %v1681 = vpop.f32.mrf.mxu0
      %v1682 = vadd.f32 %v1489, %v1681
      %v1683 = vpop.f32.mrf.mxu0
      %v1684 = vadd.f32 %v1491, %v1683
      %v1685 = vpop.f32.mrf.mxu0
      %v1686 = vadd.f32 %v1493, %v1685
      %v1687 = vpop.f32.mrf.mxu0
      %v1688 = vadd.f32 %v1495, %v1687
      %1689 = vmatprep.mubr.bf16.mxu0 %v561
      %1690 = vmatmul.mubr.bf16.gmra.mxu0 %v560
      %v1691 = vpop.f32.mrf.mxu0
      %v1692 = vadd.f32 %v1499, %v1691
      %v1693 = vpop.f32.mrf.mxu0
      %v1694 = vadd.f32 %v1501, %v1693
      %v1695 = vpop.f32.mrf.mxu0
      %v1696 = vadd.f32 %v1503, %v1695
      %v1697 = vpop.f32.mrf.mxu0
      %v1698 = vadd.f32 %v1505, %v1697
      %1699 = vmatprep.mubr.bf16.mxu0 %v569
      %1700 = vmatmul.mubr.bf16.gmra.mxu0 %v568
      %v1701 = vpop.f32.mrf.mxu0
      %v1702 = vadd.f32 %v1509, %v1701
      %v1703 = vpop.f32.mrf.mxu0
      %v1704 = vadd.f32 %v1511, %v1703
      %v1705 = vpop.f32.mrf.mxu0
      %v1706 = vadd.f32 %v1513, %v1705
      %v1707 = vpop.f32.mrf.mxu0
      %v1708 = vadd.f32 %v1515, %v1707
      %1709 = vmatprep.mubr.bf16.mxu0 %v577
      %1710 = vmatmul.mubr.bf16.gmra.mxu0 %v576
      %v1711 = vpop.f32.mrf.mxu0
      %v1712 = vadd.f32 %v1519, %v1711
      %v1713 = vpop.f32.mrf.mxu0
      %v1714 = vadd.f32 %v1521, %v1713
      %v1715 = vpop.f32.mrf.mxu0
      %v1716 = vadd.f32 %v1523, %v1715
      %v1717 = vpop.f32.mrf.mxu0
      %v1718 = vadd.f32 %v1525, %v1717
      %1719 = vmatprep.mubr.bf16.mxu0 %v585
      %1720 = vmatmul.mubr.bf16.gmra.mxu0 %v584
      %v1721 = vpop.f32.mrf.mxu0
      %v1722 = vadd.f32 %v1529, %v1721
      %v1723 = vpop.f32.mrf.mxu0
      %v1724 = vadd.f32 %v1531, %v1723
      %v1725 = vpop.f32.mrf.mxu0
      %v1726 = vadd.f32 %v1533, %v1725
      %v1727 = vpop.f32.mrf.mxu0
      %v1728 = vadd.f32 %v1535, %v1727
      %1729 = vmatprep.mubr.bf16.mxu0 %v593
      %1730 = vmatmul.mubr.bf16.gmra.mxu0 %v592
      %v1731 = vpop.f32.mrf.mxu0
      %v1732 = vadd.f32 %v1539, %v1731
      %v1733 = vpop.f32.mrf.mxu0
      %v1734 = vadd.f32 %v1541, %v1733
      %v1735 = vpop.f32.mrf.mxu0
      %v1736 = vadd.f32 %v1543, %v1735
      %v1737 = vpop.f32.mrf.mxu0
      %v1738 = vadd.f32 %v1545, %v1737
      %1739 = vmatprep.mubr.bf16.mxu0 %v601
      %1740 = vmatmul.mubr.bf16.gmra.mxu0 %v600
      %v1741 = vpop.f32.mrf.mxu0
      %v1742 = vadd.f32 %v1549, %v1741
      %v1743 = vpop.f32.mrf.mxu0
      %v1744 = vadd.f32 %v1551, %v1743
      %v1745 = vpop.f32.mrf.mxu0
      %v1746 = vadd.f32 %v1553, %v1745
      %v1747 = vpop.f32.mrf.mxu0
      %v1748 = vadd.f32 %v1555, %v1747
      %1749 = vmatprep.mubr.bf16.mxu0 %v609
      %1750 = vmatmul.mubr.bf16.gmra.mxu0 %v608
      %v1751 = vpop.f32.mrf.mxu0
      %v1752 = vadd.f32 %v1559, %v1751
      %v1753 = vpop.f32.mrf.mxu0
      %v1754 = vadd.f32 %v1561, %v1753
      %v1755 = vpop.f32.mrf.mxu0
      %v1756 = vadd.f32 %v1563, %v1755
      %v1757 = vpop.f32.mrf.mxu0
      %v1758 = vadd.f32 %v1565, %v1757
      %1759 = vmatprep.mubr.bf16.mxu0 %v617
      %1760 = vmatmul.mubr.bf16.gmra.mxu0 %v616
      %v1761 = vpop.f32.mrf.mxu0
      %v1762 = vadd.f32 %v1569, %v1761
      %v1763 = vpop.f32.mrf.mxu0
      %v1764 = vadd.f32 %v1571, %v1763
      %v1765 = vpop.f32.mrf.mxu0
      %v1766 = vadd.f32 %v1573, %v1765
      %v1767 = vpop.f32.mrf.mxu0
      %v1768 = vadd.f32 %v1575, %v1767
      %1769 = vmatprep.mubr.bf16.mxu0 %v625
      %1770 = vmatmul.mubr.bf16.gmra.mxu0 %v624
      %v1771 = vpop.f32.mrf.mxu0
      %v1772 = vadd.f32 %v1579, %v1771
      %v1773 = vpop.f32.mrf.mxu0
      %v1774 = vadd.f32 %v1581, %v1773
      %v1775 = vpop.f32.mrf.mxu0
      %v1776 = vadd.f32 %v1583, %v1775
      %v1777 = vpop.f32.mrf.mxu0
      %v1778 = vadd.f32 %v1585, %v1777
      %1779 = vmatprep.mubr.bf16.mxu0 %v633
      %1780 = vmatmul.mubr.bf16.gmra.mxu0 %v632
      %v1781 = vpop.f32.mrf.mxu0
      %v1782 = vadd.f32 %v1589, %v1781
      %v1783 = vpop.f32.mrf.mxu0
      %v1784 = vadd.f32 %v1591, %v1783
      %v1785 = vpop.f32.mrf.mxu0
      %v1786 = vadd.f32 %v1593, %v1785
      %v1787 = vpop.f32.mrf.mxu0
      %v1788 = vadd.f32 %v1595, %v1787
      %1789 = vdwg.mxu0
      %vm1790 = vcmask 556032
      %v1791 = vsel %vm1790, %v1634, 0.0
      %v1792 = vadd.f32 %v1632, %v1791
      %1793 = vadd.xlane.f32.xlu0 %v1792
      %v1794 = vpop.xlane.xlu0 %1793
      %v1795 = vsel %vm1790, %v1638, 0.0
      %v1796 = vadd.f32 %v1636, %v1795
      %1797 = vadd.xlane.f32.xlu0 %v1796
      %v1798 = vpop.xlane.xlu0 %1797
      %v1799 = vsel %vm1790, %v1644, 0.0
      %v1800 = vadd.f32 %v1642, %v1799
      %1801 = vadd.xlane.f32.xlu0 %v1800
      %v1802 = vpop.xlane.xlu0 %1801
      %v1803 = vsel %vm1790, %v1648, 0.0
      %v1804 = vadd.f32 %v1646, %v1803
      %1805 = vadd.xlane.f32.xlu0 %v1804
      %v1806 = vpop.xlane.xlu0 %1805
      %v1807 = vsel %vm1790, %v1654, 0.0
      %v1808 = vadd.f32 %v1652, %v1807
      %1809 = vadd.xlane.f32.xlu0 %v1808
      %v1810 = vpop.xlane.xlu0 %1809
      %v1811 = vsel %vm1790, %v1658, 0.0
      %v1812 = vadd.f32 %v1656, %v1811
      %1813 = vadd.xlane.f32.xlu0 %v1812
      %v1814 = vpop.xlane.xlu0 %1813
      %v1815 = vsel %vm1790, %v1664, 0.0
      %v1816 = vadd.f32 %v1662, %v1815
      %1817 = vadd.xlane.f32.xlu0 %v1816
      %v1818 = vpop.xlane.xlu0 %1817
      %v1819 = vsel %vm1790, %v1668, 0.0
      %v1820 = vadd.f32 %v1666, %v1819
      %1821 = vadd.xlane.f32.xlu0 %v1820
      %v1822 = vpop.xlane.xlu0 %1821
      %v1823 = vsel %vm1790, %v1674, 0.0
      %v1824 = vadd.f32 %v1672, %v1823
      %1825 = vadd.xlane.f32.xlu0 %v1824
      %v1826 = vpop.xlane.xlu0 %1825
      %v1827 = vsel %vm1790, %v1678, 0.0
      %v1828 = vadd.f32 %v1676, %v1827
      %1829 = vadd.xlane.f32.xlu0 %v1828
      %v1830 = vpop.xlane.xlu0 %1829
      %v1831 = vsel %vm1790, %v1684, 0.0
      %v1832 = vadd.f32 %v1682, %v1831
      %1833 = vadd.xlane.f32.xlu0 %v1832
      %v1834 = vpop.xlane.xlu0 %1833
      %v1835 = vsel %vm1790, %v1688, 0.0
      %v1836 = vadd.f32 %v1686, %v1835
      %1837 = vadd.xlane.f32.xlu0 %v1836
      %v1838 = vpop.xlane.xlu0 %1837
      %v1839 = vsel %vm1790, %v1694, 0.0
      %v1840 = vadd.f32 %v1692, %v1839
      %1841 = vadd.xlane.f32.xlu0 %v1840
      %v1842 = vpop.xlane.xlu0 %1841
      %v1843 = vsel %vm1790, %v1698, 0.0
      %v1844 = vadd.f32 %v1696, %v1843
      %1845 = vadd.xlane.f32.xlu0 %v1844
      %v1846 = vpop.xlane.xlu0 %1845
      %v1847 = vsel %vm1790, %v1704, 0.0
      %v1848 = vadd.f32 %v1702, %v1847
      %1849 = vadd.xlane.f32.xlu0 %v1848
      %v1850 = vpop.xlane.xlu0 %1849
      %v1851 = vsel %vm1790, %v1708, 0.0
      %v1852 = vadd.f32 %v1706, %v1851
      %1853 = vadd.xlane.f32.xlu0 %v1852
      %v1854 = vpop.xlane.xlu0 %1853
      %v1855 = vsel %vm1790, %v1714, 0.0
      %v1856 = vadd.f32 %v1712, %v1855
      %1857 = vadd.xlane.f32.xlu0 %v1856
      %v1858 = vpop.xlane.xlu0 %1857
      %v1859 = vsel %vm1790, %v1718, 0.0
      %v1860 = vadd.f32 %v1716, %v1859
      %1861 = vadd.xlane.f32.xlu0 %v1860
      %v1862 = vpop.xlane.xlu0 %1861
      %v1863 = vsel %vm1790, %v1724, 0.0
      %v1864 = vadd.f32 %v1722, %v1863
      %1865 = vadd.xlane.f32.xlu0 %v1864
      %v1866 = vpop.xlane.xlu0 %1865
      %v1867 = vsel %vm1790, %v1728, 0.0
      %v1868 = vadd.f32 %v1726, %v1867
      %1869 = vadd.xlane.f32.xlu0 %v1868
      %v1870 = vpop.xlane.xlu0 %1869
      %v1871 = vsel %vm1790, %v1734, 0.0
      %v1872 = vadd.f32 %v1732, %v1871
      %1873 = vadd.xlane.f32.xlu0 %v1872
      %v1874 = vpop.xlane.xlu0 %1873
      %v1875 = vsel %vm1790, %v1738, 0.0
      %v1876 = vadd.f32 %v1736, %v1875
      %1877 = vadd.xlane.f32.xlu0 %v1876
      %v1878 = vpop.xlane.xlu0 %1877
      %v1879 = vsel %vm1790, %v1744, 0.0
      %v1880 = vadd.f32 %v1742, %v1879
      %1881 = vadd.xlane.f32.xlu0 %v1880
      %v1882 = vpop.xlane.xlu0 %1881
      %v1883 = vsel %vm1790, %v1748, 0.0
      %v1884 = vadd.f32 %v1746, %v1883
      %1885 = vadd.xlane.f32.xlu0 %v1884
      %v1886 = vpop.xlane.xlu0 %1885
      %v1887 = vsel %vm1790, %v1754, 0.0
      %v1888 = vadd.f32 %v1752, %v1887
      %1889 = vadd.xlane.f32.xlu0 %v1888
      %v1890 = vpop.xlane.xlu0 %1889
      %v1891 = vsel %vm1790, %v1758, 0.0
      %v1892 = vadd.f32 %v1756, %v1891
      %1893 = vadd.xlane.f32.xlu0 %v1892
      %v1894 = vpop.xlane.xlu0 %1893
      %v1895 = vsel %vm1790, %v1764, 0.0
      %v1896 = vadd.f32 %v1762, %v1895
      %1897 = vadd.xlane.f32.xlu0 %v1896
      %v1898 = vpop.xlane.xlu0 %1897
      %v1899 = vsel %vm1790, %v1768, 0.0
      %v1900 = vadd.f32 %v1766, %v1899
      %1901 = vadd.xlane.f32.xlu0 %v1900
      %v1902 = vpop.xlane.xlu0 %1901
      %v1903 = vsel %vm1790, %v1774, 0.0
      %v1904 = vadd.f32 %v1772, %v1903
      %1905 = vadd.xlane.f32.xlu0 %v1904
      %v1906 = vpop.xlane.xlu0 %1905
      %v1907 = vsel %vm1790, %v1778, 0.0
      %v1908 = vadd.f32 %v1776, %v1907
      %1909 = vadd.xlane.f32.xlu0 %v1908
      %v1910 = vpop.xlane.xlu0 %1909
      %v1911 = vsel %vm1790, %v1784, 0.0
      %v1912 = vadd.f32 %v1782, %v1911
      %1913 = vadd.xlane.f32.xlu0 %v1912
      %v1914 = vpop.xlane.xlu0 %1913
      %v1915 = vsel %vm1790, %v1788, 0.0
      %v1916 = vadd.f32 %v1786, %v1915
      %1917 = vadd.xlane.f32.xlu0 %v1916
      %v1918 = vpop.xlane.xlu0 %1917
      %v1919 = vmul.f32 %v1794, 0.0051020407
      %v1920 = vmul.f32 %v1798, 0.0051020407
      %v1921 = vmul.f32 %v1802, 0.0051020407
      %v1922 = vmul.f32 %v1806, 0.0051020407
      %v1923 = vmul.f32 %v1810, 0.0051020407
      %v1924 = vmul.f32 %v1814, 0.0051020407
      %v1925 = vmul.f32 %v1818, 0.0051020407
      %v1926 = vmul.f32 %v1822, 0.0051020407
      %v1927 = vmul.f32 %v1826, 0.0051020407
      %v1928 = vmul.f32 %v1830, 0.0051020407
      %v1929 = vmul.f32 %v1834, 0.0051020407
      %v1930 = vmul.f32 %v1838, 0.0051020407
      %v1931 = vmul.f32 %v1842, 0.0051020407
      %v1932 = vmul.f32 %v1846, 0.0051020407
      %v1933 = vmul.f32 %v1850, 0.0051020407
      %v1934 = vmul.f32 %v1854, 0.0051020407
      %v1935 = vmul.f32 %v1858, 0.0051020407
      %v1936 = vmul.f32 %v1862, 0.0051020407
      %v1937 = vmul.f32 %v1866, 0.0051020407
      %v1938 = vmul.f32 %v1870, 0.0051020407
      %v1939 = vmul.f32 %v1874, 0.0051020407
      %v1940 = vmul.f32 %v1878, 0.0051020407
      %v1941 = vmul.f32 %v1882, 0.0051020407
      %v1942 = vmul.f32 %v1886, 0.0051020407
      %v1943 = vmul.f32 %v1890, 0.0051020407
      %v1944 = vmul.f32 %v1894, 0.0051020407
      %v1945 = vmul.f32 %v1898, 0.0051020407
      %v1946 = vmul.f32 %v1902, 0.0051020407
      %v1947 = vmul.f32 %v1906, 0.0051020407
      %v1948 = vmul.f32 %v1910, 0.0051020407
      %v1949 = vmul.f32 %v1914, 0.0051020407
      %v1950 = vmul.f32 %v1918, 0.0051020407
      %v1951 = vsub.f32 %v1632, %v1919
      %v1952 = vsub.f32 %v1634, %v1919
      %v1953 = vsub.f32 %v1636, %v1920
      %v1954 = vsub.f32 %v1638, %v1920
      %v1955 = vsub.f32 %v1642, %v1921
      %v1956 = vsub.f32 %v1644, %v1921
      %v1957 = vsub.f32 %v1646, %v1922
      %v1958 = vsub.f32 %v1648, %v1922
      %v1959 = vsub.f32 %v1652, %v1923
      %v1960 = vsub.f32 %v1654, %v1923
      %v1961 = vsub.f32 %v1656, %v1924
      %v1962 = vsub.f32 %v1658, %v1924
      %v1963 = vsub.f32 %v1662, %v1925
      %v1964 = vsub.f32 %v1664, %v1925
      %v1965 = vsub.f32 %v1666, %v1926
      %v1966 = vsub.f32 %v1668, %v1926
      %v1967 = vsub.f32 %v1672, %v1927
      %v1968 = vsub.f32 %v1674, %v1927
      %v1969 = vsub.f32 %v1676, %v1928
      %v1970 = vsub.f32 %v1678, %v1928
      %v1971 = vsub.f32 %v1682, %v1929
      %v1972 = vsub.f32 %v1684, %v1929
      %v1973 = vsub.f32 %v1686, %v1930
      %v1974 = vsub.f32 %v1688, %v1930
      %v1975 = vsub.f32 %v1692, %v1931
      %v1976 = vsub.f32 %v1694, %v1931
      %v1977 = vsub.f32 %v1696, %v1932
      %v1978 = vsub.f32 %v1698, %v1932
      %v1979 = vsub.f32 %v1702, %v1933
      %v1980 = vsub.f32 %v1704, %v1933
      %v1981 = vsub.f32 %v1706, %v1934
      %v1982 = vsub.f32 %v1708, %v1934
      %v1983 = vsub.f32 %v1712, %v1935
      %v1984 = vsub.f32 %v1714, %v1935
      %v1985 = vsub.f32 %v1716, %v1936
      %v1986 = vsub.f32 %v1718, %v1936
      %v1987 = vsub.f32 %v1722, %v1937
      %v1988 = vsub.f32 %v1724, %v1937
      %v1989 = vsub.f32 %v1726, %v1938
      %v1990 = vsub.f32 %v1728, %v1938
      %v1991 = vsub.f32 %v1732, %v1939
      %v1992 = vsub.f32 %v1734, %v1939
      %v1993 = vsub.f32 %v1736, %v1940
      %v1994 = vsub.f32 %v1738, %v1940
      %v1995 = vsub.f32 %v1742, %v1941
      %v1996 = vsub.f32 %v1744, %v1941
      %v1997 = vsub.f32 %v1746, %v1942
      %v1998 = vsub.f32 %v1748, %v1942
      %v1999 = vsub.f32 %v1752, %v1943
      %v2000 = vsub.f32 %v1754, %v1943
      %v2001 = vsub.f32 %v1756, %v1944
      %v2002 = vsub.f32 %v1758, %v1944
      %v2003 = vsub.f32 %v1762, %v1945
      %v2004 = vsub.f32 %v1764, %v1945
      %v2005 = vsub.f32 %v1766, %v1946
      %v2006 = vsub.f32 %v1768, %v1946
      %v2007 = vsub.f32 %v1772, %v1947
      %v2008 = vsub.f32 %v1774, %v1947
      %v2009 = vsub.f32 %v1776, %v1948
      %v2010 = vsub.f32 %v1778, %v1948
      %v2011 = vsub.f32 %v1782, %v1949
      %v2012 = vsub.f32 %v1784, %v1949
      %v2013 = vsub.f32 %v1786, %v1950
      %v2014 = vsub.f32 %v1788, %v1950
      %v2015 = vmul.f32 %v1951, %v1951
      %v2016 = vmul.f32 %v1952, %v1952
      %v2017 = vmul.f32 %v1953, %v1953
      %v2018 = vmul.f32 %v1954, %v1954
      %v2019 = vmul.f32 %v1955, %v1955
      %v2020 = vmul.f32 %v1956, %v1956
      %v2021 = vmul.f32 %v1957, %v1957
      %v2022 = vmul.f32 %v1958, %v1958
      %v2023 = vmul.f32 %v1959, %v1959
      %v2024 = vmul.f32 %v1960, %v1960
      %v2025 = vmul.f32 %v1961, %v1961
      %v2026 = vmul.f32 %v1962, %v1962
      %v2027 = vmul.f32 %v1963, %v1963
      %v2028 = vmul.f32 %v1964, %v1964
      %v2029 = vmul.f32 %v1965, %v1965
      %v2030 = vmul.f32 %v1966, %v1966
      %v2031 = vmul.f32 %v1967, %v1967
      %v2032 = vmul.f32 %v1968, %v1968
      %v2033 = vmul.f32 %v1969, %v1969
      %v2034 = vmul.f32 %v1970, %v1970
      %v2035 = vmul.f32 %v1971, %v1971
      %v2036 = vmul.f32 %v1972, %v1972
      %v2037 = vmul.f32 %v1973, %v1973
      %v2038 = vmul.f32 %v1974, %v1974
      %v2039 = vmul.f32 %v1975, %v1975
      %v2040 = vmul.f32 %v1976, %v1976
      %v2041 = vmul.f32 %v1977, %v1977
      %v2042 = vmul.f32 %v1978, %v1978
      %v2043 = vmul.f32 %v1979, %v1979
      %v2044 = vmul.f32 %v1980, %v1980
      %v2045 = vmul.f32 %v1981, %v1981
      %v2046 = vmul.f32 %v1982, %v1982
      %v2047 = vmul.f32 %v1983, %v1983
      %v2048 = vmul.f32 %v1984, %v1984
      %v2049 = vmul.f32 %v1985, %v1985
      %v2050 = vmul.f32 %v1986, %v1986
      %v2051 = vmul.f32 %v1987, %v1987
      %v2052 = vmul.f32 %v1988, %v1988
      %v2053 = vmul.f32 %v1989, %v1989
      %v2054 = vmul.f32 %v1990, %v1990
      %v2055 = vmul.f32 %v1991, %v1991
      %v2056 = vmul.f32 %v1992, %v1992
      %v2057 = vmul.f32 %v1993, %v1993
      %v2058 = vmul.f32 %v1994, %v1994
      %v2059 = vmul.f32 %v1995, %v1995
      %v2060 = vmul.f32 %v1996, %v1996
      %v2061 = vmul.f32 %v1997, %v1997
      %v2062 = vmul.f32 %v1998, %v1998
      %v2063 = vmul.f32 %v1999, %v1999
      %v2064 = vmul.f32 %v2000, %v2000
      %v2065 = vmul.f32 %v2001, %v2001
      %v2066 = vmul.f32 %v2002, %v2002
      %v2067 = vmul.f32 %v2003, %v2003
      %v2068 = vmul.f32 %v2004, %v2004
      %v2069 = vmul.f32 %v2005, %v2005
      %v2070 = vmul.f32 %v2006, %v2006
      %v2071 = vmul.f32 %v2007, %v2007
      %v2072 = vmul.f32 %v2008, %v2008
      %v2073 = vmul.f32 %v2009, %v2009
      %v2074 = vmul.f32 %v2010, %v2010
      %v2075 = vmul.f32 %v2011, %v2011
      %v2076 = vmul.f32 %v2012, %v2012
      %v2077 = vmul.f32 %v2013, %v2013
      %v2078 = vmul.f32 %v2014, %v2014
      %v2079 = vsel %vm1790, %v2016, 0.0
      %v2080 = vadd.f32 %v2015, %v2079
      %2081 = vadd.xlane.f32.xlu0 %v2080
      %v2082 = vpop.xlane.xlu0 %2081
      %v2083 = vsel %vm1790, %v2018, 0.0
      %v2084 = vadd.f32 %v2017, %v2083
      %2085 = vadd.xlane.f32.xlu0 %v2084
      %v2086 = vpop.xlane.xlu0 %2085
      %v2087 = vsel %vm1790, %v2020, 0.0
      %v2088 = vadd.f32 %v2019, %v2087
      %2089 = vadd.xlane.f32.xlu0 %v2088
      %v2090 = vpop.xlane.xlu0 %2089
      %v2091 = vsel %vm1790, %v2022, 0.0
      %v2092 = vadd.f32 %v2021, %v2091
      %2093 = vadd.xlane.f32.xlu0 %v2092
      %v2094 = vpop.xlane.xlu0 %2093
      %v2095 = vsel %vm1790, %v2024, 0.0
      %v2096 = vadd.f32 %v2023, %v2095
      %2097 = vadd.xlane.f32.xlu0 %v2096
      %v2098 = vpop.xlane.xlu0 %2097
      %v2099 = vsel %vm1790, %v2026, 0.0
      %v2100 = vadd.f32 %v2025, %v2099
      %2101 = vadd.xlane.f32.xlu0 %v2100
      %v2102 = vpop.xlane.xlu0 %2101
      %v2103 = vsel %vm1790, %v2028, 0.0
      %v2104 = vadd.f32 %v2027, %v2103
      %2105 = vadd.xlane.f32.xlu0 %v2104
      %v2106 = vpop.xlane.xlu0 %2105
      %v2107 = vsel %vm1790, %v2030, 0.0
      %v2108 = vadd.f32 %v2029, %v2107
      %2109 = vadd.xlane.f32.xlu0 %v2108
      %v2110 = vpop.xlane.xlu0 %2109
      %v2111 = vsel %vm1790, %v2032, 0.0
      %v2112 = vadd.f32 %v2031, %v2111
      %2113 = vadd.xlane.f32.xlu0 %v2112
      %v2114 = vpop.xlane.xlu0 %2113
      %v2115 = vsel %vm1790, %v2034, 0.0
      %v2116 = vadd.f32 %v2033, %v2115
      %2117 = vadd.xlane.f32.xlu0 %v2116
      %v2118 = vpop.xlane.xlu0 %2117
      %v2119 = vsel %vm1790, %v2036, 0.0
      %v2120 = vadd.f32 %v2035, %v2119
      %2121 = vadd.xlane.f32.xlu0 %v2120
      %v2122 = vpop.xlane.xlu0 %2121
      %v2123 = vsel %vm1790, %v2038, 0.0
      %v2124 = vadd.f32 %v2037, %v2123
      %2125 = vadd.xlane.f32.xlu0 %v2124
      %v2126 = vpop.xlane.xlu0 %2125
      %v2127 = vsel %vm1790, %v2040, 0.0
      %v2128 = vadd.f32 %v2039, %v2127
      %2129 = vadd.xlane.f32.xlu0 %v2128
      %v2130 = vpop.xlane.xlu0 %2129
      %v2131 = vsel %vm1790, %v2042, 0.0
      %v2132 = vadd.f32 %v2041, %v2131
      %2133 = vadd.xlane.f32.xlu0 %v2132
      %v2134 = vpop.xlane.xlu0 %2133
      %v2135 = vsel %vm1790, %v2044, 0.0
      %v2136 = vadd.f32 %v2043, %v2135
      %2137 = vadd.xlane.f32.xlu0 %v2136
      %v2138 = vpop.xlane.xlu0 %2137
      %v2139 = vsel %vm1790, %v2046, 0.0
      %v2140 = vadd.f32 %v2045, %v2139
      %2141 = vadd.xlane.f32.xlu0 %v2140
      %v2142 = vpop.xlane.xlu0 %2141
      %v2143 = vsel %vm1790, %v2048, 0.0
      %v2144 = vadd.f32 %v2047, %v2143
      %2145 = vadd.xlane.f32.xlu0 %v2144
      %v2146 = vpop.xlane.xlu0 %2145
      %v2147 = vsel %vm1790, %v2050, 0.0
      %v2148 = vadd.f32 %v2049, %v2147
      %2149 = vadd.xlane.f32.xlu0 %v2148
      %v2150 = vpop.xlane.xlu0 %2149
      %v2151 = vsel %vm1790, %v2052, 0.0
      %v2152 = vadd.f32 %v2051, %v2151
      %2153 = vadd.xlane.f32.xlu0 %v2152
      %v2154 = vpop.xlane.xlu0 %2153
      %v2155 = vsel %vm1790, %v2054, 0.0
      %v2156 = vadd.f32 %v2053, %v2155
      %2157 = vadd.xlane.f32.xlu0 %v2156
      %v2158 = vpop.xlane.xlu0 %2157
      %v2159 = vsel %vm1790, %v2056, 0.0
      %v2160 = vadd.f32 %v2055, %v2159
      %2161 = vadd.xlane.f32.xlu0 %v2160
      %v2162 = vpop.xlane.xlu0 %2161
      %v2163 = vsel %vm1790, %v2058, 0.0
      %v2164 = vadd.f32 %v2057, %v2163
      %2165 = vadd.xlane.f32.xlu0 %v2164
      %v2166 = vpop.xlane.xlu0 %2165
      %v2167 = vsel %vm1790, %v2060, 0.0
      %v2168 = vadd.f32 %v2059, %v2167
      %2169 = vadd.xlane.f32.xlu0 %v2168
      %v2170 = vpop.xlane.xlu0 %2169
      %v2171 = vsel %vm1790, %v2062, 0.0
      %v2172 = vadd.f32 %v2061, %v2171
      %2173 = vadd.xlane.f32.xlu0 %v2172
      %v2174 = vpop.xlane.xlu0 %2173
      %v2175 = vsel %vm1790, %v2064, 0.0
      %v2176 = vadd.f32 %v2063, %v2175
      %2177 = vadd.xlane.f32.xlu0 %v2176
      %v2178 = vpop.xlane.xlu0 %2177
      %v2179 = vsel %vm1790, %v2066, 0.0
      %v2180 = vadd.f32 %v2065, %v2179
      %2181 = vadd.xlane.f32.xlu0 %v2180
      %v2182 = vpop.xlane.xlu0 %2181
      %v2183 = vsel %vm1790, %v2068, 0.0
      %v2184 = vadd.f32 %v2067, %v2183
      %2185 = vadd.xlane.f32.xlu0 %v2184
      %v2186 = vpop.xlane.xlu0 %2185
      %v2187 = vsel %vm1790, %v2070, 0.0
      %v2188 = vadd.f32 %v2069, %v2187
      %2189 = vadd.xlane.f32.xlu0 %v2188
      %v2190 = vpop.xlane.xlu0 %2189
      %v2191 = vsel %vm1790, %v2072, 0.0
      %v2192 = vadd.f32 %v2071, %v2191
      %2193 = vadd.xlane.f32.xlu0 %v2192
      %v2194 = vpop.xlane.xlu0 %2193
      %v2195 = vsel %vm1790, %v2074, 0.0
      %v2196 = vadd.f32 %v2073, %v2195
      %2197 = vadd.xlane.f32.xlu0 %v2196
      %v2198 = vpop.xlane.xlu0 %2197
      %v2199 = vsel %vm1790, %v2076, 0.0
      %v2200 = vadd.f32 %v2075, %v2199
      %2201 = vadd.xlane.f32.xlu0 %v2200
      %v2202 = vpop.xlane.xlu0 %2201
      %v2203 = vsel %vm1790, %v2078, 0.0
      %v2204 = vadd.f32 %v2077, %v2203
      %2205 = vadd.xlane.f32.xlu0 %v2204
      %v2206 = vpop.xlane.xlu0 %2205
      %v2207 = vmul.f32 %v2082, 0.0051020407
      %v2208 = vmul.f32 %v2086, 0.0051020407
      %v2209 = vmul.f32 %v2090, 0.0051020407
      %v2210 = vmul.f32 %v2094, 0.0051020407
      %v2211 = vmul.f32 %v2098, 0.0051020407
      %v2212 = vmul.f32 %v2102, 0.0051020407
      %v2213 = vmul.f32 %v2106, 0.0051020407
      %v2214 = vmul.f32 %v2110, 0.0051020407
      %v2215 = vmul.f32 %v2114, 0.0051020407
      %v2216 = vmul.f32 %v2118, 0.0051020407
      %v2217 = vmul.f32 %v2122, 0.0051020407
      %v2218 = vmul.f32 %v2126, 0.0051020407
      %v2219 = vmul.f32 %v2130, 0.0051020407
      %v2220 = vmul.f32 %v2134, 0.0051020407
      %v2221 = vmul.f32 %v2138, 0.0051020407
      %v2222 = vmul.f32 %v2142, 0.0051020407
      %v2223 = vmul.f32 %v2146, 0.0051020407
      %v2224 = vmul.f32 %v2150, 0.0051020407
      %v2225 = vmul.f32 %v2154, 0.0051020407
      %v2226 = vmul.f32 %v2158, 0.0051020407
      %v2227 = vmul.f32 %v2162, 0.0051020407
      %v2228 = vmul.f32 %v2166, 0.0051020407
      %v2229 = vmul.f32 %v2170, 0.0051020407
      %v2230 = vmul.f32 %v2174, 0.0051020407
      %v2231 = vmul.f32 %v2178, 0.0051020407
      %v2232 = vmul.f32 %v2182, 0.0051020407
      %v2233 = vmul.f32 %v2186, 0.0051020407
      %v2234 = vmul.f32 %v2190, 0.0051020407
      %v2235 = vmul.f32 %v2194, 0.0051020407
      %v2236 = vmul.f32 %v2198, 0.0051020407
      %v2237 = vmul.f32 %v2202, 0.0051020407
      %v2238 = vmul.f32 %v2206, 0.0051020407
      %v2239 = vadd.f32 %v2207, 1e-05
      %v2240 = vadd.f32 %v2208, 1e-05
      %v2241 = vadd.f32 %v2209, 1e-05
      %v2242 = vadd.f32 %v2210, 1e-05
      %v2243 = vadd.f32 %v2211, 1e-05
      %v2244 = vadd.f32 %v2212, 1e-05
      %v2245 = vadd.f32 %v2213, 1e-05
      %v2246 = vadd.f32 %v2214, 1e-05
      %v2247 = vadd.f32 %v2215, 1e-05
      %v2248 = vadd.f32 %v2216, 1e-05
      %v2249 = vadd.f32 %v2217, 1e-05
      %v2250 = vadd.f32 %v2218, 1e-05
      %v2251 = vadd.f32 %v2219, 1e-05
      %v2252 = vadd.f32 %v2220, 1e-05
      %v2253 = vadd.f32 %v2221, 1e-05
      %v2254 = vadd.f32 %v2222, 1e-05
      %v2255 = vadd.f32 %v2223, 1e-05
      %v2256 = vadd.f32 %v2224, 1e-05
      %v2257 = vadd.f32 %v2225, 1e-05
      %v2258 = vadd.f32 %v2226, 1e-05
      %v2259 = vadd.f32 %v2227, 1e-05
      %v2260 = vadd.f32 %v2228, 1e-05
      %v2261 = vadd.f32 %v2229, 1e-05
      %v2262 = vadd.f32 %v2230, 1e-05
      %v2263 = vadd.f32 %v2231, 1e-05
      %v2264 = vadd.f32 %v2232, 1e-05
      %v2265 = vadd.f32 %v2233, 1e-05
      %v2266 = vadd.f32 %v2234, 1e-05
      %v2267 = vadd.f32 %v2235, 1e-05
      %v2268 = vadd.f32 %v2236, 1e-05
      %v2269 = vadd.f32 %v2237, 1e-05
      %v2270 = vadd.f32 %v2238, 1e-05
      %v2271 = vrsqrt.pop %v2239
      %v2272 = vrsqrt.pop %v2240
      %v2273 = vrsqrt.pop %v2241
      %v2274 = vrsqrt.pop %v2242
      %v2275 = vrsqrt.pop %v2243
      %v2276 = vrsqrt.pop %v2244
      %v2277 = vrsqrt.pop %v2245
      %v2278 = vrsqrt.pop %v2246
      %v2279 = vrsqrt.pop %v2247
      %v2280 = vrsqrt.pop %v2248
      %v2281 = vrsqrt.pop %v2249
      %v2282 = vrsqrt.pop %v2250
      %v2283 = vrsqrt.pop %v2251
      %v2284 = vrsqrt.pop %v2252
      %v2285 = vrsqrt.pop %v2253
      %v2286 = vrsqrt.pop %v2254
      %v2287 = vrsqrt.pop %v2255
      %v2288 = vrsqrt.pop %v2256
      %v2289 = vrsqrt.pop %v2257
      %v2290 = vrsqrt.pop %v2258
      %v2291 = vrsqrt.pop %v2259
      %v2292 = vrsqrt.pop %v2260
      %v2293 = vrsqrt.pop %v2261
      %v2294 = vrsqrt.pop %v2262
      %v2295 = vrsqrt.pop %v2263
      %v2296 = vrsqrt.pop %v2264
      %v2297 = vrsqrt.pop %v2265
      %v2298 = vrsqrt.pop %v2266
      %v2299 = vrsqrt.pop %v2267
      %v2300 = vrsqrt.pop %v2268
      %v2301 = vrsqrt.pop %v2269
      %v2302 = vrsqrt.pop %v2270
      %v2303 = vld [vmem:[%s235] sm:$0xff]
      %v2304 = vld [vmem:[%s235 + $0x8] sm:$0xff]
      %v2305 = vld [vmem:[%s235 + $0x10] sm:$0xff]
      %v2306 = vld [vmem:[%s235 + $0x18] sm:$0xff]
      %v2307 = vld [vmem:[%s235 + $0x20] sm:$0xff]
      %v2308 = vld [vmem:[%s235 + $0x28] sm:$0xff]
      %v2309 = vld [vmem:[%s235 + $0x30] sm:$0xff]
      %v2310 = vld [vmem:[%s235 + $0x38] sm:$0xff]
      %v2311 = vld [vmem:[%s235 + $0x40] sm:$0xff]
      %v2312 = vld [vmem:[%s235 + $0x48] sm:$0xff]
      %v2313 = vld [vmem:[%s235 + $0x50] sm:$0xff]
      %v2314 = vld [vmem:[%s235 + $0x58] sm:$0xff]
      %v2315 = vld [vmem:[%s235 + $0x60] sm:$0xff]
      %v2316 = vld [vmem:[%s235 + $0x68] sm:$0xff]
      %v2317 = vld [vmem:[%s235 + $0x70] sm:$0xff]
      %v2318 = vld [vmem:[%s235 + $0x78] sm:$0xff]
      %v2319 = vld [vmem:[%s235 + $0x80] sm:$0xff]
      %v2320 = vld [vmem:[%s235 + $0x88] sm:$0xff]
      %v2321 = vld [vmem:[%s235 + $0x90] sm:$0xff]
      %v2322 = vld [vmem:[%s235 + $0x98] sm:$0xff]
      %v2323 = vld [vmem:[%s235 + $0xa0] sm:$0xff]
      %v2324 = vld [vmem:[%s235 + $0xa8] sm:$0xff]
      %v2325 = vld [vmem:[%s235 + $0xb0] sm:$0xff]
      %v2326 = vld [vmem:[%s235 + $0xb8] sm:$0xff]
      %v2327 = vld [vmem:[%s235 + $0xc0] sm:$0xff]
      %v2328 = vld [vmem:[%s235 + $0xc8] sm:$0xff]
      %v2329 = vld [vmem:[%s235 + $0xd0] sm:$0xff]
      %v2330 = vld [vmem:[%s235 + $0xd8] sm:$0xff]
      %v2331 = vld [vmem:[%s235 + $0xe0] sm:$0xff]
      %v2332 = vld [vmem:[%s235 + $0xe8] sm:$0xff]
      %v2333 = vld [vmem:[%s235 + $0xf0] sm:$0xff]
      %v2334 = vld [vmem:[%s235 + $0xf8] sm:$0xff]
      %v2335 = vmul.f32 %v2271, %v2303
      %v2336 = vmul.f32 %v2272, %v2304
      %v2337 = vmul.f32 %v2273, %v2305
      %v2338 = vmul.f32 %v2274, %v2306
      %v2339 = vmul.f32 %v2275, %v2307
      %v2340 = vmul.f32 %v2276, %v2308
      %v2341 = vmul.f32 %v2277, %v2309
      %v2342 = vmul.f32 %v2278, %v2310
      %v2343 = vmul.f32 %v2279, %v2311
      %v2344 = vmul.f32 %v2280, %v2312
      %v2345 = vmul.f32 %v2281, %v2313
      %v2346 = vmul.f32 %v2282, %v2314
      %v2347 = vmul.f32 %v2283, %v2315
      %v2348 = vmul.f32 %v2284, %v2316
      %v2349 = vmul.f32 %v2285, %v2317
      %v2350 = vmul.f32 %v2286, %v2318
      %v2351 = vmul.f32 %v2287, %v2319
      %v2352 = vmul.f32 %v2288, %v2320
      %v2353 = vmul.f32 %v2289, %v2321
      %v2354 = vmul.f32 %v2290, %v2322
      %v2355 = vmul.f32 %v2291, %v2323
      %v2356 = vmul.f32 %v2292, %v2324
      %v2357 = vmul.f32 %v2293, %v2325
      %v2358 = vmul.f32 %v2294, %v2326
      %v2359 = vmul.f32 %v2295, %v2327
      %v2360 = vmul.f32 %v2296, %v2328
      %v2361 = vmul.f32 %v2297, %v2329
      %v2362 = vmul.f32 %v2298, %v2330
      %v2363 = vmul.f32 %v2299, %v2331
      %v2364 = vmul.f32 %v2300, %v2332
      %v2365 = vmul.f32 %v2301, %v2333
      %v2366 = vmul.f32 %v2302, %v2334
      %2368 = vset.pattern.permute.xlu0 0
      %2369 = vperm.xlu0 %2368, %v2335
      %v2370 = vpop.permute.xlu0 %2369
      %2373 = vset.pattern.permute.xlu0 0
      %2374 = vperm.xlu0 %2373, %v2336
      %v2375 = vpop.permute.xlu0 %2374
      %2378 = vset.pattern.permute.xlu0 0
      %2379 = vperm.xlu0 %2378, %v2337
      %v2380 = vpop.permute.xlu0 %2379
      %2383 = vset.pattern.permute.xlu0 0
      %2384 = vperm.xlu0 %2383, %v2338
      %v2385 = vpop.permute.xlu0 %2384
      %2388 = vset.pattern.permute.xlu0 0
      %2389 = vperm.xlu0 %2388, %v2339
      %v2390 = vpop.permute.xlu0 %2389
      %2393 = vset.pattern.permute.xlu0 0
      %2394 = vperm.xlu0 %2393, %v2340
      %v2395 = vpop.permute.xlu0 %2394
      %2398 = vset.pattern.permute.xlu0 0
      %2399 = vperm.xlu0 %2398, %v2341
      %v2400 = vpop.permute.xlu0 %2399
      %2403 = vset.pattern.permute.xlu0 0
      %2404 = vperm.xlu0 %2403, %v2342
      %v2405 = vpop.permute.xlu0 %2404
      %2408 = vset.pattern.permute.xlu0 0
      %2409 = vperm.xlu0 %2408, %v2343
      %v2410 = vpop.permute.xlu0 %2409
      %2413 = vset.pattern.permute.xlu0 0
      %2414 = vperm.xlu0 %2413, %v2344
      %v2415 = vpop.permute.xlu0 %2414
      %2418 = vset.pattern.permute.xlu0 0
      %2419 = vperm.xlu0 %2418, %v2345
      %v2420 = vpop.permute.xlu0 %2419
      %2423 = vset.pattern.permute.xlu0 0
      %2424 = vperm.xlu0 %2423, %v2346
      %v2425 = vpop.permute.xlu0 %2424
      %2428 = vset.pattern.permute.xlu0 0
      %2429 = vperm.xlu0 %2428, %v2347
      %v2430 = vpop.permute.xlu0 %2429
      %2433 = vset.pattern.permute.xlu0 0
      %2434 = vperm.xlu0 %2433, %v2348
      %v2435 = vpop.permute.xlu0 %2434
      %2438 = vset.pattern.permute.xlu0 0
      %2439 = vperm.xlu0 %2438, %v2349
      %v2440 = vpop.permute.xlu0 %2439
      %2443 = vset.pattern.permute.xlu0 0
      %2444 = vperm.xlu0 %2443, %v2350
      %v2445 = vpop.permute.xlu0 %2444
      %2448 = vset.pattern.permute.xlu0 0
      %2449 = vperm.xlu0 %2448, %v2351
      %v2450 = vpop.permute.xlu0 %2449
      %2453 = vset.pattern.permute.xlu0 0
      %2454 = vperm.xlu0 %2453, %v2352
      %v2455 = vpop.permute.xlu0 %2454
      %2458 = vset.pattern.permute.xlu0 0
      %2459 = vperm.xlu0 %2458, %v2353
      %v2460 = vpop.permute.xlu0 %2459
      %2463 = vset.pattern.permute.xlu0 0
      %2464 = vperm.xlu0 %2463, %v2354
      %v2465 = vpop.permute.xlu0 %2464
      %2468 = vset.pattern.permute.xlu0 0
      %2469 = vperm.xlu0 %2468, %v2355
      %v2470 = vpop.permute.xlu0 %2469
      %2473 = vset.pattern.permute.xlu0 0
      %2474 = vperm.xlu0 %2473, %v2356
      %v2475 = vpop.permute.xlu0 %2474
      %2478 = vset.pattern.permute.xlu0 0
      %2479 = vperm.xlu0 %2478, %v2357
      %v2480 = vpop.permute.xlu0 %2479
      %2483 = vset.pattern.permute.xlu0 0
      %2484 = vperm.xlu0 %2483, %v2358
      %v2485 = vpop.permute.xlu0 %2484
      %2488 = vset.pattern.permute.xlu0 0
      %2489 = vperm.xlu0 %2488, %v2359
      %v2490 = vpop.permute.xlu0 %2489
      %2493 = vset.pattern.permute.xlu0 0
      %2494 = vperm.xlu0 %2493, %v2360
      %v2495 = vpop.permute.xlu0 %2494
      %2498 = vset.pattern.permute.xlu0 0
      %2499 = vperm.xlu0 %2498, %v2361
      %v2500 = vpop.permute.xlu0 %2499
      %2503 = vset.pattern.permute.xlu0 0
      %2504 = vperm.xlu0 %2503, %v2362
      %v2505 = vpop.permute.xlu0 %2504
      %2508 = vset.pattern.permute.xlu0 0
      %2509 = vperm.xlu0 %2508, %v2363
      %v2510 = vpop.permute.xlu0 %2509
      %2513 = vset.pattern.permute.xlu0 0
      %2514 = vperm.xlu0 %2513, %v2364
      %v2515 = vpop.permute.xlu0 %2514
      %2518 = vset.pattern.permute.xlu0 0
      %2519 = vperm.xlu0 %2518, %v2365
      %v2520 = vpop.permute.xlu0 %2519
      %2523 = vset.pattern.permute.xlu0 0
      %2524 = vperm.xlu0 %2523, %v2366
      %v2525 = vpop.permute.xlu0 %2524
      %v2527 = vmul.f32 %v1951, %v2370
      %v2528 = vmul.f32 %v1952, %v2370
      %v2529 = vmul.f32 %v1953, %v2375
      %v2530 = vmul.f32 %v1954, %v2375
      %v2531 = vmul.f32 %v1955, %v2380
      %v2532 = vmul.f32 %v1956, %v2380
      %v2533 = vmul.f32 %v1957, %v2385
      %v2534 = vmul.f32 %v1958, %v2385
      %v2535 = vmul.f32 %v1959, %v2390
      %v2536 = vmul.f32 %v1960, %v2390
      %v2537 = vmul.f32 %v1961, %v2395
      %v2538 = vmul.f32 %v1962, %v2395
      %v2539 = vmul.f32 %v1963, %v2400
      %v2540 = vmul.f32 %v1964, %v2400
      %v2541 = vmul.f32 %v1965, %v2405
      %v2542 = vmul.f32 %v1966, %v2405
      %v2543 = vmul.f32 %v1967, %v2410
      %v2544 = vmul.f32 %v1968, %v2410
      %v2545 = vmul.f32 %v1969, %v2415
      %v2546 = vmul.f32 %v1970, %v2415
      %v2547 = vmul.f32 %v1971, %v2420
      %v2548 = vmul.f32 %v1972, %v2420
      %v2549 = vmul.f32 %v1973, %v2425
      %v2550 = vmul.f32 %v1974, %v2425
      %v2551 = vmul.f32 %v1975, %v2430
      %v2552 = vmul.f32 %v1976, %v2430
      %v2553 = vmul.f32 %v1977, %v2435
      %v2554 = vmul.f32 %v1978, %v2435
      %v2555 = vmul.f32 %v1979, %v2440
      %v2556 = vmul.f32 %v1980, %v2440
      %v2557 = vmul.f32 %v1981, %v2445
      %v2558 = vmul.f32 %v1982, %v2445
      %v2559 = vmul.f32 %v1983, %v2450
      %v2560 = vmul.f32 %v1984, %v2450
      %v2561 = vmul.f32 %v1985, %v2455
      %v2562 = vmul.f32 %v1986, %v2455
      %v2563 = vmul.f32 %v1987, %v2460
      %v2564 = vmul.f32 %v1988, %v2460
      %v2565 = vmul.f32 %v1989, %v2465
      %v2566 = vmul.f32 %v1990, %v2465
      %v2567 = vmul.f32 %v1991, %v2470
      %v2568 = vmul.f32 %v1992, %v2470
      %v2569 = vmul.f32 %v1993, %v2475
      %v2570 = vmul.f32 %v1994, %v2475
      %v2571 = vmul.f32 %v1995, %v2480
      %v2572 = vmul.f32 %v1996, %v2480
      %v2573 = vmul.f32 %v1997, %v2485
      %v2574 = vmul.f32 %v1998, %v2485
      %v2575 = vmul.f32 %v1999, %v2490
      %v2576 = vmul.f32 %v2000, %v2490
      %v2577 = vmul.f32 %v2001, %v2495
      %v2578 = vmul.f32 %v2002, %v2495
      %v2579 = vmul.f32 %v2003, %v2500
      %v2580 = vmul.f32 %v2004, %v2500
      %v2581 = vmul.f32 %v2005, %v2505
      %v2582 = vmul.f32 %v2006, %v2505
      %v2583 = vmul.f32 %v2007, %v2510
      %v2584 = vmul.f32 %v2008, %v2510
      %v2585 = vmul.f32 %v2009, %v2515
      %v2586 = vmul.f32 %v2010, %v2515
      %v2587 = vmul.f32 %v2011, %v2520
      %v2588 = vmul.f32 %v2012, %v2520
      %v2589 = vmul.f32 %v2013, %v2525
      %v2590 = vmul.f32 %v2014, %v2525
      %v2591 = vld [vmem:[%s241] sm:$0xff]
      %v2592 = vld [vmem:[%s241 + $0x8] sm:$0xff]
      %v2593 = vld [vmem:[%s241 + $0x10] sm:$0xff]
      %v2594 = vld [vmem:[%s241 + $0x18] sm:$0xff]
      %v2595 = vld [vmem:[%s241 + $0x20] sm:$0xff]
      %v2596 = vld [vmem:[%s241 + $0x28] sm:$0xff]
      %v2597 = vld [vmem:[%s241 + $0x30] sm:$0xff]
      %v2598 = vld [vmem:[%s241 + $0x38] sm:$0xff]
      %v2599 = vld [vmem:[%s241 + $0x40] sm:$0xff]
      %v2600 = vld [vmem:[%s241 + $0x48] sm:$0xff]
      %v2601 = vld [vmem:[%s241 + $0x50] sm:$0xff]
      %v2602 = vld [vmem:[%s241 + $0x58] sm:$0xff]
      %v2603 = vld [vmem:[%s241 + $0x60] sm:$0xff]
      %v2604 = vld [vmem:[%s241 + $0x68] sm:$0xff]
      %v2605 = vld [vmem:[%s241 + $0x70] sm:$0xff]
      %v2606 = vld [vmem:[%s241 + $0x78] sm:$0xff]
      %v2607 = vld [vmem:[%s241 + $0x80] sm:$0xff]
      %v2608 = vld [vmem:[%s241 + $0x88] sm:$0xff]
      %v2609 = vld [vmem:[%s241 + $0x90] sm:$0xff]
      %v2610 = vld [vmem:[%s241 + $0x98] sm:$0xff]
      %v2611 = vld [vmem:[%s241 + $0xa0] sm:$0xff]
      %v2612 = vld [vmem:[%s241 + $0xa8] sm:$0xff]
      %v2613 = vld [vmem:[%s241 + $0xb0] sm:$0xff]
      %v2614 = vld [vmem:[%s241 + $0xb8] sm:$0xff]
      %v2615 = vld [vmem:[%s241 + $0xc0] sm:$0xff]
      %v2616 = vld [vmem:[%s241 + $0xc8] sm:$0xff]
      %v2617 = vld [vmem:[%s241 + $0xd0] sm:$0xff]
      %v2618 = vld [vmem:[%s241 + $0xd8] sm:$0xff]
      %v2619 = vld [vmem:[%s241 + $0xe0] sm:$0xff]
      %v2620 = vld [vmem:[%s241 + $0xe8] sm:$0xff]
      %v2621 = vld [vmem:[%s241 + $0xf0] sm:$0xff]
      %v2622 = vld [vmem:[%s241 + $0xf8] sm:$0xff]
      %2624 = vset.pattern.permute.xlu0 0
      %2625 = vperm.xlu0 %2624, %v2591
      %v2626 = vpop.permute.xlu0 %2625
      %2629 = vset.pattern.permute.xlu0 0
      %2630 = vperm.xlu0 %2629, %v2592
      %v2631 = vpop.permute.xlu0 %2630
      %2634 = vset.pattern.permute.xlu0 0
      %2635 = vperm.xlu0 %2634, %v2593
      %v2636 = vpop.permute.xlu0 %2635
      %2639 = vset.pattern.permute.xlu0 0
      %2640 = vperm.xlu0 %2639, %v2594
      %v2641 = vpop.permute.xlu0 %2640
      %2644 = vset.pattern.permute.xlu0 0
      %2645 = vperm.xlu0 %2644, %v2595
      %v2646 = vpop.permute.xlu0 %2645
      %2649 = vset.pattern.permute.xlu0 0
      %2650 = vperm.xlu0 %2649, %v2596
      %v2651 = vpop.permute.xlu0 %2650
      %2654 = vset.pattern.permute.xlu0 0
      %2655 = vperm.xlu0 %2654, %v2597
      %v2656 = vpop.permute.xlu0 %2655
      %2659 = vset.pattern.permute.xlu0 0
      %2660 = vperm.xlu0 %2659, %v2598
      %v2661 = vpop.permute.xlu0 %2660
      %2664 = vset.pattern.permute.xlu0 0
      %2665 = vperm.xlu0 %2664, %v2599
      %v2666 = vpop.permute.xlu0 %2665
      %2669 = vset.pattern.permute.xlu0 0
      %2670 = vperm.xlu0 %2669, %v2600
      %v2671 = vpop.permute.xlu0 %2670
      %2674 = vset.pattern.permute.xlu0 0
      %2675 = vperm.xlu0 %2674, %v2601
      %v2676 = vpop.permute.xlu0 %2675
      %2679 = vset.pattern.permute.xlu0 0
      %2680 = vperm.xlu0 %2679, %v2602
      %v2681 = vpop.permute.xlu0 %2680
      %2684 = vset.pattern.permute.xlu0 0
      %2685 = vperm.xlu0 %2684, %v2603
      %v2686 = vpop.permute.xlu0 %2685
      %2689 = vset.pattern.permute.xlu0 0
      %2690 = vperm.xlu0 %2689, %v2604
      %v2691 = vpop.permute.xlu0 %2690
      %2694 = vset.pattern.permute.xlu0 0
      %2695 = vperm.xlu0 %2694, %v2605
      %v2696 = vpop.permute.xlu0 %2695
      %2699 = vset.pattern.permute.xlu0 0
      %2700 = vperm.xlu0 %2699, %v2606
      %v2701 = vpop.permute.xlu0 %2700
      %2704 = vset.pattern.permute.xlu0 0
      %2705 = vperm.xlu0 %2704, %v2607
      %v2706 = vpop.permute.xlu0 %2705
      %2709 = vset.pattern.permute.xlu0 0
      %2710 = vperm.xlu0 %2709, %v2608
      %v2711 = vpop.permute.xlu0 %2710
      %2714 = vset.pattern.permute.xlu0 0
      %2715 = vperm.xlu0 %2714, %v2609
      %v2716 = vpop.permute.xlu0 %2715
      %2719 = vset.pattern.permute.xlu0 0
      %2720 = vperm.xlu0 %2719, %v2610
      %v2721 = vpop.permute.xlu0 %2720
      %2724 = vset.pattern.permute.xlu0 0
      %2725 = vperm.xlu0 %2724, %v2611
      %v2726 = vpop.permute.xlu0 %2725
      %2729 = vset.pattern.permute.xlu0 0
      %2730 = vperm.xlu0 %2729, %v2612
      %v2731 = vpop.permute.xlu0 %2730
      %2734 = vset.pattern.permute.xlu0 0
      %2735 = vperm.xlu0 %2734, %v2613
      %v2736 = vpop.permute.xlu0 %2735
      %2739 = vset.pattern.permute.xlu0 0
      %2740 = vperm.xlu0 %2739, %v2614
      %v2741 = vpop.permute.xlu0 %2740
      %2744 = vset.pattern.permute.xlu0 0
      %2745 = vperm.xlu0 %2744, %v2615
      %v2746 = vpop.permute.xlu0 %2745
      %2749 = vset.pattern.permute.xlu0 0
      %2750 = vperm.xlu0 %2749, %v2616
      %v2751 = vpop.permute.xlu0 %2750
      %2754 = vset.pattern.permute.xlu0 0
      %2755 = vperm.xlu0 %2754, %v2617
      %v2756 = vpop.permute.xlu0 %2755
      %2759 = vset.pattern.permute.xlu0 0
      %2760 = vperm.xlu0 %2759, %v2618
      %v2761 = vpop.permute.xlu0 %2760
      %2764 = vset.pattern.permute.xlu0 0
      %2765 = vperm.xlu0 %2764, %v2619
      %v2766 = vpop.permute.xlu0 %2765
      %2769 = vset.pattern.permute.xlu0 0
      %2770 = vperm.xlu0 %2769, %v2620
      %v2771 = vpop.permute.xlu0 %2770
      %2774 = vset.pattern.permute.xlu0 0
      %2775 = vperm.xlu0 %2774, %v2621
      %v2776 = vpop.permute.xlu0 %2775
      %2779 = vset.pattern.permute.xlu0 0
      %2780 = vperm.xlu0 %2779, %v2622
      %v2781 = vpop.permute.xlu0 %2780
      %v2783 = vadd.f32 %v2527, %v2626
      %v2784 = vadd.f32 %v2528, %v2626
      %v2785 = vadd.f32 %v2529, %v2631
      %v2786 = vadd.f32 %v2530, %v2631
      %v2787 = vadd.f32 %v2531, %v2636
      %v2788 = vadd.f32 %v2532, %v2636
      %v2789 = vadd.f32 %v2533, %v2641
      %v2790 = vadd.f32 %v2534, %v2641
      %v2791 = vadd.f32 %v2535, %v2646
      %v2792 = vadd.f32 %v2536, %v2646
      %v2793 = vadd.f32 %v2537, %v2651
      %v2794 = vadd.f32 %v2538, %v2651
      %v2795 = vadd.f32 %v2539, %v2656
      %v2796 = vadd.f32 %v2540, %v2656
      %v2797 = vadd.f32 %v2541, %v2661
      %v2798 = vadd.f32 %v2542, %v2661
      %v2799 = vadd.f32 %v2543, %v2666
      %v2800 = vadd.f32 %v2544, %v2666
      %v2801 = vadd.f32 %v2545, %v2671
      %v2802 = vadd.f32 %v2546, %v2671
      %v2803 = vadd.f32 %v2547, %v2676
      %v2804 = vadd.f32 %v2548, %v2676
      %v2805 = vadd.f32 %v2549, %v2681
      %v2806 = vadd.f32 %v2550, %v2681
      %v2807 = vadd.f32 %v2551, %v2686
      %v2808 = vadd.f32 %v2552, %v2686
      %v2809 = vadd.f32 %v2553, %v2691
      %v2810 = vadd.f32 %v2554, %v2691
      %v2811 = vadd.f32 %v2555, %v2696
      %v2812 = vadd.f32 %v2556, %v2696
      %v2813 = vadd.f32 %v2557, %v2701
      %v2814 = vadd.f32 %v2558, %v2701
      %v2815 = vadd.f32 %v2559, %v2706
      %v2816 = vadd.f32 %v2560, %v2706
      %v2817 = vadd.f32 %v2561, %v2711
      %v2818 = vadd.f32 %v2562, %v2711
      %v2819 = vadd.f32 %v2563, %v2716
      %v2820 = vadd.f32 %v2564, %v2716
      %v2821 = vadd.f32 %v2565, %v2721
      %v2822 = vadd.f32 %v2566, %v2721
      %v2823 = vadd.f32 %v2567, %v2726
      %v2824 = vadd.f32 %v2568, %v2726
      %v2825 = vadd.f32 %v2569, %v2731
      %v2826 = vadd.f32 %v2570, %v2731
      %v2827 = vadd.f32 %v2571, %v2736
      %v2828 = vadd.f32 %v2572, %v2736
      %v2829 = vadd.f32 %v2573, %v2741
      %v2830 = vadd.f32 %v2574, %v2741
      %v2831 = vadd.f32 %v2575, %v2746
      %v2832 = vadd.f32 %v2576, %v2746
      %v2833 = vadd.f32 %v2577, %v2751
      %v2834 = vadd.f32 %v2578, %v2751
      %v2835 = vadd.f32 %v2579, %v2756
      %v2836 = vadd.f32 %v2580, %v2756
      %v2837 = vadd.f32 %v2581, %v2761
      %v2838 = vadd.f32 %v2582, %v2761
      %v2839 = vadd.f32 %v2583, %v2766
      %v2840 = vadd.f32 %v2584, %v2766
      %v2841 = vadd.f32 %v2585, %v2771
      %v2842 = vadd.f32 %v2586, %v2771
      %v2843 = vadd.f32 %v2587, %v2776
      %v2844 = vadd.f32 %v2588, %v2776
      %v2845 = vadd.f32 %v2589, %v2781
      %v2846 = vadd.f32 %v2590, %v2781
      %v2847 = vmax.f32 %v2783, 0.0
      %v2848 = vmax.f32 %v2784, 0.0
      %v2849 = vmax.f32 %v2785, 0.0
      %v2850 = vmax.f32 %v2786, 0.0
      %v2851 = vmax.f32 %v2787, 0.0
      %v2852 = vmax.f32 %v2788, 0.0
      %v2853 = vmax.f32 %v2789, 0.0
      %v2854 = vmax.f32 %v2790, 0.0
      %v2855 = vmax.f32 %v2791, 0.0
      %v2856 = vmax.f32 %v2792, 0.0
      %v2857 = vmax.f32 %v2793, 0.0
      %v2858 = vmax.f32 %v2794, 0.0
      %v2859 = vmax.f32 %v2795, 0.0
      %v2860 = vmax.f32 %v2796, 0.0
      %v2861 = vmax.f32 %v2797, 0.0
      %v2862 = vmax.f32 %v2798, 0.0
      %v2863 = vmax.f32 %v2799, 0.0
      %v2864 = vmax.f32 %v2800, 0.0
      %v2865 = vmax.f32 %v2801, 0.0
      %v2866 = vmax.f32 %v2802, 0.0
      %v2867 = vmax.f32 %v2803, 0.0
      %v2868 = vmax.f32 %v2804, 0.0
      %v2869 = vmax.f32 %v2805, 0.0
      %v2870 = vmax.f32 %v2806, 0.0
      %v2871 = vmax.f32 %v2807, 0.0
      %v2872 = vmax.f32 %v2808, 0.0
      %v2873 = vmax.f32 %v2809, 0.0
      %v2874 = vmax.f32 %v2810, 0.0
      %v2875 = vmax.f32 %v2811, 0.0
      %v2876 = vmax.f32 %v2812, 0.0
      %v2877 = vmax.f32 %v2813, 0.0
      %v2878 = vmax.f32 %v2814, 0.0
      %v2879 = vmax.f32 %v2815, 0.0
      %v2880 = vmax.f32 %v2816, 0.0
      %v2881 = vmax.f32 %v2817, 0.0
      %v2882 = vmax.f32 %v2818, 0.0
      %v2883 = vmax.f32 %v2819, 0.0
      %v2884 = vmax.f32 %v2820, 0.0
      %v2885 = vmax.f32 %v2821, 0.0
      %v2886 = vmax.f32 %v2822, 0.0
      %v2887 = vmax.f32 %v2823, 0.0
      %v2888 = vmax.f32 %v2824, 0.0
      %v2889 = vmax.f32 %v2825, 0.0
      %v2890 = vmax.f32 %v2826, 0.0
      %v2891 = vmax.f32 %v2827, 0.0
      %v2892 = vmax.f32 %v2828, 0.0
      %v2893 = vmax.f32 %v2829, 0.0
      %v2894 = vmax.f32 %v2830, 0.0
      %v2895 = vmax.f32 %v2831, 0.0
      %v2896 = vmax.f32 %v2832, 0.0
      %v2897 = vmax.f32 %v2833, 0.0
      %v2898 = vmax.f32 %v2834, 0.0
      %v2899 = vmax.f32 %v2835, 0.0
      %v2900 = vmax.f32 %v2836, 0.0
      %v2901 = vmax.f32 %v2837, 0.0
      %v2902 = vmax.f32 %v2838, 0.0
      %v2903 = vmax.f32 %v2839, 0.0
      %v2904 = vmax.f32 %v2840, 0.0
      %v2905 = vmax.f32 %v2841, 0.0
      %v2906 = vmax.f32 %v2842, 0.0
      %v2907 = vmax.f32 %v2843, 0.0
      %v2908 = vmax.f32 %v2844, 0.0
      %v2909 = vmax.f32 %v2845, 0.0
      %v2910 = vmax.f32 %v2846, 0.0
      %2911 = vst [vmem:[%s248] sm:$0xff] %v2847
      %2912 = vst.msk [vmem:[%s248 + $0x8] sm:$0xff] %vm1790, %v2848
      %2913 = vst [vmem:[%s248 + $0x10] sm:$0xff] %v2849
      %2914 = vst.msk [vmem:[%s248 + $0x18] sm:$0xff] %vm1790, %v2850
      %2915 = vst [vmem:[%s248 + $0x20] sm:$0xff] %v2851
      %2916 = vst.msk [vmem:[%s248 + $0x28] sm:$0xff] %vm1790, %v2852
      %2917 = vst [vmem:[%s248 + $0x30] sm:$0xff] %v2853
      %2918 = vst.msk [vmem:[%s248 + $0x38] sm:$0xff] %vm1790, %v2854
      %2919 = vst [vmem:[%s248 + $0x40] sm:$0xff] %v2855
      %2920 = vst.msk [vmem:[%s248 + $0x48] sm:$0xff] %vm1790, %v2856
      %2921 = vst [vmem:[%s248 + $0x50] sm:$0xff] %v2857
      %2922 = vst.msk [vmem:[%s248 + $0x58] sm:$0xff] %vm1790, %v2858
      %2923 = vst [vmem:[%s248 + $0x60] sm:$0xff] %v2859
      %2924 = vst.msk [vmem:[%s248 + $0x68] sm:$0xff] %vm1790, %v2860
      %2925 = vst [vmem:[%s248 + $0x70] sm:$0xff] %v2861
      %2926 = vst.msk [vmem:[%s248 + $0x78] sm:$0xff] %vm1790, %v2862
      %2927 = vst [vmem:[%s248 + $0x80] sm:$0xff] %v2863
      %2928 = vst.msk [vmem:[%s248 + $0x88] sm:$0xff] %vm1790, %v2864
      %2929 = vst [vmem:[%s248 + $0x90] sm:$0xff] %v2865
      %2930 = vst.msk [vmem:[%s248 + $0x98] sm:$0xff] %vm1790, %v2866
      %2931 = vst [vmem:[%s248 + $0xa0] sm:$0xff] %v2867
      %2932 = vst.msk [vmem:[%s248 + $0xa8] sm:$0xff] %vm1790, %v2868
      %2933 = vst [vmem:[%s248 + $0xb0] sm:$0xff] %v2869
      %2934 = vst.msk [vmem:[%s248 + $0xb8] sm:$0xff] %vm1790, %v2870
      %2935 = vst [vmem:[%s248 + $0xc0] sm:$0xff] %v2871
      %2936 = vst.msk [vmem:[%s248 + $0xc8] sm:$0xff] %vm1790, %v2872
      %2937 = vst [vmem:[%s248 + $0xd0] sm:$0xff] %v2873
      %2938 = vst.msk [vmem:[%s248 + $0xd8] sm:$0xff] %vm1790, %v2874
      %2939 = vst [vmem:[%s248 + $0xe0] sm:$0xff] %v2875
      %2940 = vst.msk [vmem:[%s248 + $0xe8] sm:$0xff] %vm1790, %v2876
      %2941 = vst [vmem:[%s248 + $0xf0] sm:$0xff] %v2877
      %2942 = vst.msk [vmem:[%s248 + $0xf8] sm:$0xff] %vm1790, %v2878
      %2943 = vst [vmem:[%s248 + $0x100] sm:$0xff] %v2879
      %2944 = vst.msk [vmem:[%s248 + $0x108] sm:$0xff] %vm1790, %v2880
      %2945 = vst [vmem:[%s248 + $0x110] sm:$0xff] %v2881
      %2946 = vst.msk [vmem:[%s248 + $0x118] sm:$0xff] %vm1790, %v2882
      %2947 = vst [vmem:[%s248 + $0x120] sm:$0xff] %v2883
      %2948 = vst.msk [vmem:[%s248 + $0x128] sm:$0xff] %vm1790, %v2884
      %2949 = vst [vmem:[%s248 + $0x130] sm:$0xff] %v2885
      %2950 = vst.msk [vmem:[%s248 + $0x138] sm:$0xff] %vm1790, %v2886
      %2951 = vst [vmem:[%s248 + $0x140] sm:$0xff] %v2887
      %2952 = vst.msk [vmem:[%s248 + $0x148] sm:$0xff] %vm1790, %v2888
      %2953 = vst [vmem:[%s248 + $0x150] sm:$0xff] %v2889
      %2954 = vst.msk [vmem:[%s248 + $0x158] sm:$0xff] %vm1790, %v2890
      %2955 = vst [vmem:[%s248 + $0x160] sm:$0xff] %v2891
      %2956 = vst.msk [vmem:[%s248 + $0x168] sm:$0xff] %vm1790, %v2892
      %2957 = vst [vmem:[%s248 + $0x170] sm:$0xff] %v2893
      %2958 = vst.msk [vmem:[%s248 + $0x178] sm:$0xff] %vm1790, %v2894
      %2959 = vst [vmem:[%s248 + $0x180] sm:$0xff] %v2895
      %2960 = vst.msk [vmem:[%s248 + $0x188] sm:$0xff] %vm1790, %v2896
      %2961 = vst [vmem:[%s248 + $0x190] sm:$0xff] %v2897
      %2962 = vst.msk [vmem:[%s248 + $0x198] sm:$0xff] %vm1790, %v2898
      %2963 = vst [vmem:[%s248 + $0x1a0] sm:$0xff] %v2899
      %2964 = vst.msk [vmem:[%s248 + $0x1a8] sm:$0xff] %vm1790, %v2900
      %2965 = vst [vmem:[%s248 + $0x1b0] sm:$0xff] %v2901
      %2966 = vst.msk [vmem:[%s248 + $0x1b8] sm:$0xff] %vm1790, %v2902
      %2967 = vst [vmem:[%s248 + $0x1c0] sm:$0xff] %v2903
      %2968 = vst.msk [vmem:[%s248 + $0x1c8] sm:$0xff] %vm1790, %v2904
      %2969 = vst [vmem:[%s248 + $0x1d0] sm:$0xff] %v2905
      %2970 = vst.msk [vmem:[%s248 + $0x1d8] sm:$0xff] %vm1790, %v2906
      %2971 = vst [vmem:[%s248 + $0x1e0] sm:$0xff] %v2907
      %2972 = vst.msk [vmem:[%s248 + $0x1e8] sm:$0xff] %vm1790, %v2908
      %2973 = vst [vmem:[%s248 + $0x1f0] sm:$0xff] %v2909
      %2974 = vst.msk [vmem:[%s248 + $0x1f8] sm:$0xff] %vm1790, %v2910
      %s2975 = smul.u32 32, %s15
      %p2976 = scmp.lt.s32.totalorder %s2975, 127
      %s2977 = scalar_select %p2976, %s2975, 127
      %s2978 = smul.addr %s2977, 2
      %s2979 = smul.addr %s2978, 8
      %s2980 = scalar_lea.vmem %s4, %s2979
      // Predicated region
      $region37: #{conv_bn_relu.1} parent=35 // pred_check
        %p2981 = pneg %p132
      $region38: #{conv_bn_relu.1} parent=35 // pred_check_branch
        %2983 = sbr.rel (%p2981) target = $region40
      $region39: #{conv_bn_relu.1} parent=35 // pred_region
        %s2984 = smul.u32 32, %s15
      $region40: #{conv_bn_relu.1} parent=35 // pred_fallthru
        _
    $region36: #{conv_bn_relu.1} parent=5 // pred_fallthru
      _
    %p2985 = scmp.le.s32.totalorder 2, %s10
    // Predicated region
    $region41: #{conv_bn_relu.1} parent=5 // pred_check
      %p2986 = pneg %p2985
    $region42: #{conv_bn_relu.1} parent=5 // pred_check_branch
      %2988 = sbr.rel (%p2986) target = $region44
    $region43: #{conv_bn_relu.1} parent=5 // pred_region
      %s2989 = ssub.s32 %s10, 2
      // Predicated region
      $region45: #{conv_bn_relu.1} parent=43 // pred_check
        %p2990 = pneg %p138
      $region46: #{conv_bn_relu.1} parent=43 // pred_check_branch
        %2992 = sbr.rel (%p2990) target = $region48
      $region47: #{conv_bn_relu.1} parent=43 // pred_region
        %s2993 = smul.u32 32, %s16
        %p2994 = scmp.lt.s32.totalorder %s2993, 127
        %s2995 = scalar_select %p2994, %s2993, 127
        %s2996 = smul.addr %s2995, 2
        %s2997 = smul.addr %s2996, 8
        %s2998 = scalar_lea.vmem %s4, %s2997
      $region48: #{conv_bn_relu.1} parent=43 // pred_fallthru
        _
    $region44: #{conv_bn_relu.1} parent=5 // pred_fallthru
      _
  $region6: #{conv_bn_relu.1} parent=0 // loop_footer
    %s14 = sadd.s32 1, %s10
  $region7: #{conv_bn_relu.1} parent=0 // loop_footer_branch
    %9 = sbr.rel target = $region3
  $region8: #{conv_bn_relu.1} parent=0 // loop_exit
    _

</llo_original>
